<compile_context>
chip_gen: v7x
topology: tpu7x:2x2x1
jax: 0.10.0
libtpu: 0.0.40
codegen_flags: <defaults>
</compile_context>

<pallas_src>
import math
from functools import partial

import jax
import jax.numpy as jnp
from jax.experimental import pallas as pl
from jax.experimental.pallas import tpu as pltpu

LN_EPS = 1e-5  # PyTorch nn.LayerNorm default


def _layer_norm(v, w, b):
    mu = jnp.mean(v, axis=-1, keepdims=True)
    var = jnp.mean((v - mu) ** 2, axis=-1, keepdims=True)
    return (v - mu) * jax.lax.rsqrt(var + LN_EPS) * w + b


def transformer_kernel(n_head, x_ref,
                       ln1w_ref, ln1b_ref, wqkv_ref, bqkv_ref, wo_ref, bo_ref,
                       ln2w_ref, ln2b_ref, wfc_ref, bfc_ref, wpr_ref, bpr_ref,
                       out_ref):
    """Fused transformer stack. grid = (batch_blocks 'parallel', layers 'arbitrary').

    x_ref/out_ref blocks: (BB, S, D). Weight refs carry a leading per-layer block dim of 1.
    The activation lives in out_ref across the layer axis (same output block index for all l).
    """
    layer = pl.program_id(1)

    # Initialize the resident activation from the input on the first layer only.
    @pl.when(layer == 0)
    def _():
        out_ref[...] = x_ref[...]

    xb = out_ref[...].astype(jnp.float32)          # (BB, S, D)
    BB, S, D = xb.shape
    N = BB * S
    H = n_head
    hd = D // H
    scale = 1.0 / math.sqrt(hd)
    cdt = wqkv_ref.dtype                           # matmul compute dtype (bf16 or f32)

    x2 = xb.reshape(N, D)                          # tall token matrix (minor dims preserved)

    # ---- x = x + attn(ln_1(x)) ----
    h1 = _layer_norm(x2, ln1w_ref[0, 0], ln1b_ref[0, 0])
    qkv = jnp.dot(h1.astype(cdt), wqkv_ref[0],
                  preferred_element_type=jnp.float32) + bqkv_ref[0, 0]     # (N, 3D), f32
    # Fold 1/sqrt(hd) into q (one (N, D) multiply instead of per-head (S, S) ones).
    q = (qkv[:, 0 * D:1 * D] * scale).astype(cdt).reshape(BB, S, D)
    k = qkv[:, 1 * D:2 * D].astype(cdt).reshape(BB, S, D)
    v = qkv[:, 2 * D:3 * D].astype(cdt).reshape(BB, S, D)

    wo = wo_ref[0]                                  # (D, D) in compute dtype
    attn = jnp.zeros((N, D), jnp.float32)
    for hh in range(H):                             # static unroll over heads
        sl = slice(hh * hd, (hh + 1) * hd)
        s = jnp.einsum('bqd,bkd->bqk', q[..., sl], k[..., sl],
                       preferred_element_type=jnp.float32)                 # (BB, S, S)
        s = s - jnp.max(s, axis=-1, keepdims=True)
        p = jnp.exp(s)
        p = p * pl.reciprocal(jnp.sum(p, axis=-1, keepdims=True), approx=True)
        oh = jnp.einsum('bqk,bkd->bqd', p.astype(cdt), v[..., sl],
                        preferred_element_type=jnp.float32)                # (BB, S, hd)
        # Fold this head's slice of the output projection (no lane-dim concatenate).
        attn = attn + jnp.dot(oh.reshape(N, hd).astype(cdt), wo[sl, :],
                              preferred_element_type=jnp.float32)
    x2 = x2 + attn + bo_ref[0, 0]

    # ---- x = x + mlp(ln_2(x)) ----
    h2 = _layer_norm(x2, ln2w_ref[0, 0], ln2b_ref[0, 0])
    fc = jnp.dot(h2.astype(cdt), wfc_ref[0],
                 preferred_element_type=jnp.float32) + bfc_ref[0, 0]       # (N, 4D), f32
    g = fc * jax.nn.sigmoid(1.702 * fc)             # QuickGELU, kept in f32
    mlp = jnp.dot(g.astype(cdt), wpr_ref[0],
                  preferred_element_type=jnp.float32) + bpr_ref[0, 0]
    x2 = x2 + mlp

    out_ref[...] = x2.reshape(BB, S, D).astype(out_ref.dtype)


def _stacked_specs(stacked_params):
    """BlockSpecs for per-layer-stacked parameters: block = (1, *param_shape), indexed by layer."""
    specs = []
    for p in stacked_params:
        blk = (1,) + p.shape[1:]
        nd = len(blk)
        specs.append(pl.BlockSpec(blk, lambda b, l, _nd=nd: (l,) + (0,) * (_nd - 1)))
    return specs


def _pick_batch_blocks(B, S, D):
    """Number of batch blocks: >=2 when possible (v7x has 2 TensorCores), and small enough that
    per-block f32 intermediates (x, qkv, fc, g, mlp, ...) stay within a VMEM budget."""
    row_bytes = D * 4 * 12                          # ~12 f32 "width-units" of live intermediates
    budget = 10 << 20                               # per-block activation budget
    target = 2 if (B % 2 == 0 and B >= 2) else 1
    for cand in range(target, B + 1):
        if B % cand == 0 and (B // cand) * S * row_bytes <= budget:
            return cand
    return B


def transformer_forward(x_sbd, layer_params, n_head, *, matmul_dtype=jnp.bfloat16):
    """Matches Transformer.forward: x is (seq, batch, width); attn_mask=None.
    Gradient checkpointing is a training-only memory trick with identical forward semantics."""
    S, B, D = x_sbd.shape
    L = len(layer_params)
    assert D % n_head == 0

    # Stack per-layer params along a leading 'layer' axis -> single pipelined pallas_call.
    stacked = [jnp.stack([lp[i] for lp in layer_params], axis=0)
               for i in range(len(layer_params[0]))]
    for idx in (2, 4, 8, 10):                       # wqkv, wo, wfc, wpr -> matmul dtype
        stacked[idx] = stacked[idx].astype(matmul_dtype)

    # (S, B, D) -> (B, S, D) once per forward (2 transposes total for the whole fused stack).
    # TODO(synk): at production shapes fold this boundary transpose into the producing/consuming
    # layers' layout instead of a standalone XLA transpose.
    x_bsd = jnp.transpose(x_sbd, (1, 0, 2))

    nb = _pick_batch_blocks(B, S, D)
    bb = B // nb

    x_spec = pl.BlockSpec((bb, S, D), lambda b, l: (b, 0, 0))
    out_spec = pl.BlockSpec((bb, S, D), lambda b, l: (b, 0, 0))

    # VMEM budget: double-buffered per-layer weights + resident activation + headroom.
    wbytes = sum(int(p.nbytes) // L for p in stacked)
    abytes = bb * S * D * 4
    vmem_limit = int(max(32 << 20, min(64 << 20, 4 * (2 * wbytes + 8 * abytes))))

    hd = D // n_head
    flops_layer = (2 * B * S * D * 3 * D            # qkv projection
                   + 4 * B * n_head * S * S * hd    # QK^T + PV
                   + 2 * B * S * D * D              # output projection
                   + 4 * B * S * D * 4 * D)         # MLP
    cost = pl.CostEstimate(
        flops=L * flops_layer,
        transcendentals=L * (B * n_head * S * S + B * S * 4 * D),
        bytes_accessed=2 * int(x_bsd.nbytes) + nb * sum(int(p.nbytes) for p in stacked))

    out_bsd = pl.pallas_call(
        partial(transformer_kernel, n_head),
        out_shape=jax.ShapeDtypeStruct((B, S, D), x_bsd.dtype),
        grid=(nb, L),
        in_specs=[x_spec] + _stacked_specs(stacked),
        out_specs=out_spec,
        input_output_aliases={0: 0},                # activation slab updated in place (P8)
        compiler_params=pltpu.CompilerParams(
            dimension_semantics=("parallel", "arbitrary"),
            vmem_limit_bytes=vmem_limit),
        cost_estimate=cost,
    )(x_bsd, *stacked)

    return jnp.transpose(out_bsd, (1, 0, 2))        # back to (S, B, D)


# ---------------- pure-JAX f32 reference (same math, no Pallas) ----------------
def reference_forward(x_sbd, layer_params, n_head):
    x = jnp.transpose(x_sbd, (1, 0, 2)).astype(jnp.float32)
    for (ln1w, ln1b, wqkv, bqkv, wo, bo, ln2w, ln2b, wfc, bfc, wpr, bpr) in layer_params:
        B, S, D = x.shape
        hd = D // n_head
        h = _layer_norm(x, ln1w[0], ln1b[0])
        qkv = h @ wqkv + bqkv[0]
        q, k, v = qkv[..., :D], qkv[..., D:2 * D], qkv[..., 2 * D:]
        q = q.reshape(B, S, n_head, hd).transpose(0, 2, 1, 3)
        k = k.reshape(B, S, n_head, hd).transpose(0, 2, 1, 3)
        v = v.reshape(B, S, n_head, hd).transpose(0, 2, 1, 3)
        s = jnp.einsum('bhqd,bhkd->bhqk', q, k) / math.sqrt(hd)
        p = jax.nn.softmax(s, axis=-1)
        o = jnp.einsum('bhqk,bhkd->bhqd', p, v).transpose(0, 2, 1, 3).reshape(B, S, D)
        x = x + o @ wo + bo[0]
        h2 = _layer_norm(x, ln2w[0], ln2b[0])
        fc = h2 @ wfc + bfc[0]
        g = fc * jax.nn.sigmoid(1.702 * fc)
        x = x + g @ wpr + bpr[0]
    return jnp.transpose(x, (1, 0, 2))


# ---------------- deterministic parameter init ----------------
def init_layer_params(key, D):
    ks = jax.random.split(key, 8)
    f32 = jnp.float32
    ln1w = jnp.ones((1, D), f32)
    ln1b = jnp.zeros((1, D), f32)
    # PyTorch in_proj_weight is (3D, D); stored transposed (D, 3D) for x @ W.
    wqkv = jax.random.normal(ks[0], (D, 3 * D), f32) * 0.02
    bqkv = jax.random.normal(ks[1], (1, 3 * D), f32) * 0.02
    wo = jax.random.normal(ks[2], (D, D), f32) * 0.02
    bo = jax.random.normal(ks[3], (1, D), f32) * 0.02
    ln2w = jnp.ones((1, D), f32)
    ln2b = jnp.zeros((1, D), f32)
    wfc = jax.random.normal(ks[4], (D, 4 * D), f32) * 0.02
    bfc = jax.random.normal(ks[5], (1, 4 * D), f32) * 0.02
    wpr = jax.random.normal(ks[6], (4 * D, D), f32) * 0.02
    bpr = jax.random.normal(ks[7], (1, D), f32) * 0.02
    return (ln1w, ln1b, wqkv, bqkv, wo, bo, ln2w, ln2b, wfc, bfc, wpr, bpr)


if __name__ == "__main__":
    # Transformer(width=32, layers=2, heads=4); input x: (seq=8, batch=2, width=32)
    WIDTH, LAYERS, HEADS = 32, 2, 4
    SEQ, BATCH = 8, 2
    # attn_mask is None in this instantiation; checkpointing has identical forward semantics.

    root = jax.random.PRNGKey(0)
    kx, kp = jax.random.split(root)
    x = jax.random.normal(kx, (SEQ, BATCH, WIDTH), jnp.float32)
    layer_keys = jax.random.split(kp, LAYERS)
    layer_params = [init_layer_params(layer_keys[i], WIDTH) for i in range(LAYERS)]

    ref = jax.block_until_ready(reference_forward(x, layer_params, HEADS))

    # Exact-precision path (f32 matmuls): tight agreement with the PyTorch-equivalent reference.
    out_f32 = jax.block_until_ready(
        transformer_forward(x, layer_params, HEADS, matmul_dtype=jnp.float32))
    assert out_f32.shape == (SEQ, BATCH, WIDTH)
    assert jnp.allclose(out_f32, ref, rtol=5e-3, atol=5e-3), "f32 Pallas output mismatch vs reference"

    # bf16 matmul path (MXU-native on v6e/v7x); looser tolerance due to bf16 rounding.
    out_bf16 = jax.block_until_ready(
        transformer_forward(x, layer_params, HEADS, matmul_dtype=jnp.bfloat16))
    assert out_bf16.shape == (SEQ, BATCH, WIDTH)
    assert jnp.allclose(out_bf16, ref, rtol=5e-2, atol=5e-2), "bf16 Pallas output mismatch vs reference"

    print("KERNEL_OK")
</pallas_src>

<mosaic_0001>
module attributes {stable_mosaic.version = 11 : i64} {
  func.func @transformer_kernel(%arg0: i32, %arg1: i32, %arg2: memref<1x8x32xf32, #tpu.memory_space<vmem>>, %arg3: memref<1x1x32xf32, #tpu.memory_space<vmem>>, %arg4: memref<1x1x32xf32, #tpu.memory_space<vmem>>, %arg5: memref<1x32x96xf32, #tpu.memory_space<vmem>>, %arg6: memref<1x1x96xf32, #tpu.memory_space<vmem>>, %arg7: memref<1x32x32xf32, #tpu.memory_space<vmem>>, %arg8: memref<1x1x32xf32, #tpu.memory_space<vmem>>, %arg9: memref<1x1x32xf32, #tpu.memory_space<vmem>>, %arg10: memref<1x1x32xf32, #tpu.memory_space<vmem>>, %arg11: memref<1x32x128xf32, #tpu.memory_space<vmem>>, %arg12: memref<1x1x128xf32, #tpu.memory_space<vmem>>, %arg13: memref<1x128x32xf32, #tpu.memory_space<vmem>>, %arg14: memref<1x1x32xf32, #tpu.memory_space<vmem>>, %arg15: memref<1x8x32xf32, #tpu.memory_space<vmem>>) attributes {dimension_semantics = [#tpu.dimension_semantics<parallel>, #tpu.dimension_semantics<arbitrary>], iteration_bounds = array<i64: 2, 2>, scalar_prefetch = 0 : i64, scratch_operands = 0 : i64, tpu.core_type = #tpu.core_type<tc>, window_params = [{transform_indices = @transform_0, window_bounds = array<i64: 1, 8, 32>}, {transform_indices = @transform_1, window_bounds = array<i64: 1, 1, 32>}, {transform_indices = @transform_2, window_bounds = array<i64: 1, 1, 32>}, {transform_indices = @transform_3, window_bounds = array<i64: 1, 32, 96>}, {transform_indices = @transform_4, window_bounds = array<i64: 1, 1, 96>}, {transform_indices = @transform_5, window_bounds = array<i64: 1, 32, 32>}, {transform_indices = @transform_6, window_bounds = array<i64: 1, 1, 32>}, {transform_indices = @transform_7, window_bounds = array<i64: 1, 1, 32>}, {transform_indices = @transform_8, window_bounds = array<i64: 1, 1, 32>}, {transform_indices = @transform_9, window_bounds = array<i64: 1, 32, 128>}, {transform_indices = @transform_10, window_bounds = array<i64: 1, 1, 128>}, {transform_indices = @transform_11, window_bounds = array<i64: 1, 128, 32>}, {transform_indices = @transform_12, window_bounds = array<i64: 1, 1, 32>}, {transform_indices = @transform_13, window_bounds = array<i64: 1, 8, 32>}]} {
    %c0_i32 = arith.constant 0 : i32
    %0 = arith.cmpi eq, %arg1, %c0_i32 : i32
    %1 = arith.extui %0 : i1 to i32
    %c0_i32_0 = arith.constant 0 : i32
    %2 = arith.cmpi ne, %1, %c0_i32_0 : i32
    scf.if %2 {
      %c0_78 = arith.constant 0 : index
      %c0_79 = arith.constant 0 : index
      %c0_80 = arith.constant 0 : index
      %189 = vector.load %arg2[%c0_78, %c0_79, %c0_80] : memref<1x8x32xf32, #tpu.memory_space<vmem>>, vector<1x8x32xf32>
      %c0_81 = arith.constant 0 : index
      %c0_82 = arith.constant 0 : index
      %c0_83 = arith.constant 0 : index
      %190 = vector.load %arg15[%c0_81, %c0_82, %c0_83] : memref<1x8x32xf32, #tpu.memory_space<vmem>>, vector<1x8x32xf32>
      tpu.vector_store %arg15[%c0_81, %c0_82, %c0_83], %189 {strides = array<i32>} : memref<1x8x32xf32, #tpu.memory_space<vmem>>, vector<1x8x32xf32>,
    } else {
    }
    %c0 = arith.constant 0 : index
    %c0_1 = arith.constant 0 : index
    %c0_2 = arith.constant 0 : index
    %3 = vector.load %arg15[%c0, %c0_1, %c0_2] : memref<1x8x32xf32, #tpu.memory_space<vmem>>, vector<1x8x32xf32>
    %4 = vector.shape_cast %3 : vector<1x8x32xf32> to vector<8x32xf32>
    %c0_3 = arith.constant 0 : index
    %c0_4 = arith.constant 0 : index
    %c0_5 = arith.constant 0 : index
    %5 = vector.load %arg3[%c0_3, %c0_4, %c0_5] : memref<1x1x32xf32, #tpu.memory_space<vmem>>, vector<1x1x32xf32>
    %6 = vector.shape_cast %5 : vector<1x1x32xf32> to vector<32xf32>
    %c0_6 = arith.constant 0 : index
    %c0_7 = arith.constant 0 : index
    %c0_8 = arith.constant 0 : index
    %7 = vector.load %arg4[%c0_6, %c0_7, %c0_8] : memref<1x1x32xf32, #tpu.memory_space<vmem>>, vector<1x1x32xf32>
    %8 = vector.shape_cast %7 : vector<1x1x32xf32> to vector<32xf32>
    %cst = arith.constant dense<0.000000e+00> : vector<8xf32>
    %9 = vector.multi_reduction <add>, %4, %cst [1] : vector<8x32xf32> to vector<8xf32>
    %10 = vector.shape_cast %9 : vector<8xf32> to vector<8x1xf32>
    %cst_9 = arith.constant 3.200000e+01 : f32
    %11 = vector.broadcast %cst_9 : f32 to vector<8x1xf32>
    %12 = arith.divf %10, %11 : vector<8x1xf32>
    %13 = vector.broadcast %12 : vector<8x1xf32> to vector<8x32xf32>
    %14 = arith.subf %4, %13 : vector<8x32xf32>
    %15 = arith.mulf %14, %14 : vector<8x32xf32>
    %cst_10 = arith.constant dense<0.000000e+00> : vector<8xf32>
    %16 = vector.multi_reduction <add>, %15, %cst_10 [1] : vector<8x32xf32> to vector<8xf32>
    %17 = vector.shape_cast %16 : vector<8xf32> to vector<8x1xf32>
    %cst_11 = arith.constant 3.200000e+01 : f32
    %18 = vector.broadcast %cst_11 : f32 to vector<8x1xf32>
    %19 = arith.divf %17, %18 : vector<8x1xf32>
    %20 = vector.broadcast %12 : vector<8x1xf32> to vector<8x32xf32>
    %21 = arith.subf %4, %20 : vector<8x32xf32>
    %cst_12 = arith.constant 9.99999974E-6 : f32
    %22 = vector.broadcast %cst_12 : f32 to vector<8x1xf32>
    %23 = arith.addf %19, %22 : vector<8x1xf32>
    %24 = math.rsqrt %23 : vector<8x1xf32>
    %25 = vector.broadcast %24 : vector<8x1xf32> to vector<8x32xf32>
    %26 = arith.mulf %21, %25 : vector<8x32xf32>
    %27 = vector.shape_cast %6 : vector<32xf32> to vector<1x32xf32>
    %28 = vector.broadcast %27 : vector<1x32xf32> to vector<8x32xf32>
    %29 = arith.mulf %26, %28 : vector<8x32xf32>
    %30 = vector.shape_cast %8 : vector<32xf32> to vector<1x32xf32>
    %31 = vector.broadcast %30 : vector<1x32xf32> to vector<8x32xf32>
    %32 = arith.addf %29, %31 : vector<8x32xf32>
    %c0_13 = arith.constant 0 : index
    %c0_14 = arith.constant 0 : index
    %c0_15 = arith.constant 0 : index
    %33 = vector.load %arg5[%c0_13, %c0_14, %c0_15] : memref<1x32x96xf32, #tpu.memory_space<vmem>>, vector<1x32x96xf32>
    %34 = vector.shape_cast %33 : vector<1x32x96xf32> to vector<32x96xf32>
    %cst_16 = arith.constant dense<0.000000e+00> : vector<8x96xf32>
    %35 = tpu.matmul %32, %34, %cst_16 {dimension_numbers = #tpu.dot_dimension_numbers<[1], [0], [0], [1], [0, 0, 1, 1], [], []>} : vector<8x32xf32>, vector<32x96xf32>, vector<8x96xf32> -> vector<8x96xf32>
    %c0_17 = arith.constant 0 : index
    %c0_18 = arith.constant 0 : index
    %c0_19 = arith.constant 0 : index
    %36 = vector.load %arg6[%c0_17, %c0_18, %c0_19] : memref<1x1x96xf32, #tpu.memory_space<vmem>>, vector<1x1x96xf32>
    %37 = vector.shape_cast %36 : vector<1x1x96xf32> to vector<96xf32>
    %38 = vector.shape_cast %37 : vector<96xf32> to vector<1x96xf32>
    %39 = vector.broadcast %38 : vector<1x96xf32> to vector<8x96xf32>
    %40 = arith.addf %35, %39 : vector<8x96xf32>
    %41 = vector.extract_strided_slice %40 {offsets = [0, 0], sizes = [8, 32], strides = [1, 1]} : vector<8x96xf32> to vector<8x32xf32>
    %cst_20 = arith.constant 0.353553385 : f32
    %42 = vector.broadcast %cst_20 : f32 to vector<8x32xf32>
    %43 = arith.mulf %41, %42 : vector<8x32xf32>
    %44 = vector.shape_cast %43 : vector<8x32xf32> to vector<1x8x32xf32>
    %45 = vector.extract_strided_slice %40 {offsets = [0, 32], sizes = [8, 32], strides = [1, 1]} : vector<8x96xf32> to vector<8x32xf32>
    %46 = vector.shape_cast %45 : vector<8x32xf32> to vector<1x8x32xf32>
    %47 = vector.extract_strided_slice %40 {offsets = [0, 64], sizes = [8, 32], strides = [1, 1]} : vector<8x96xf32> to vector<8x32xf32>
    %48 = vector.shape_cast %47 : vector<8x32xf32> to vector<1x8x32xf32>
    %c0_21 = arith.constant 0 : index
    %c0_22 = arith.constant 0 : index
    %c0_23 = arith.constant 0 : index
    %49 = vector.load %arg7[%c0_21, %c0_22, %c0_23] : memref<1x32x32xf32, #tpu.memory_space<vmem>>, vector<1x32x32xf32>
    %50 = vector.shape_cast %49 : vector<1x32x32xf32> to vector<32x32xf32>
    %cst_24 = arith.constant 0.000000e+00 : f32
    %51 = vector.broadcast %cst_24 : f32 to vector<8x32xf32>
    %52 = vector.extract_strided_slice %44 {offsets = [0, 0, 0], sizes = [1, 8, 8], strides = [1, 1, 1]} : vector<1x8x32xf32> to vector<1x8x8xf32>
    %53 = vector.extract_strided_slice %46 {offsets = [0, 0, 0], sizes = [1, 8, 8], strides = [1, 1, 1]} : vector<1x8x32xf32> to vector<1x8x8xf32>
    "tpu.trace_start"() <{level = 10 : i32, message = "bqd,bkd->bqk"}> : () -> ()
    %cst_25 = arith.constant dense<0.000000e+00> : vector<1x8x8xf32>
    %54 = tpu.matmul %52, %53, %cst_25 {dimension_numbers = #tpu.dot_dimension_numbers<[2], [2], [1], [1], [0, 0, 0, 1, 1, 1], [0], [0]>} : vector<1x8x8xf32>, vector<1x8x8xf32>, vector<1x8x8xf32> -> vector<1x8x8xf32>
    "tpu.trace_stop"() : () -> ()
    %cst_26 = arith.constant dense<0xFF800000> : vector<1x8xf32>
    %55 = vector.multi_reduction <maximumf>, %54, %cst_26 [2] : vector<1x8x8xf32> to vector<1x8xf32>
    %56 = vector.shape_cast %55 : vector<1x8xf32> to vector<1x8x1xf32>
    %57 = vector.broadcast %56 : vector<1x8x1xf32> to vector<1x8x8xf32>
    %58 = arith.subf %54, %57 : vector<1x8x8xf32>
    %59 = math.exp %58 : vector<1x8x8xf32>
    %cst_27 = arith.constant dense<0.000000e+00> : vector<1x8xf32>
    %60 = vector.multi_reduction <add>, %59, %cst_27 [2] : vector<1x8x8xf32> to vector<1x8xf32>
    %61 = vector.shape_cast %60 : vector<1x8xf32> to vector<1x8x1xf32>
    %62 = tpu.reciprocal %61 {approx = true} : vector<1x8x1xf32> -> vector<1x8x1xf32>
    %63 = vector.broadcast %62 : vector<1x8x1xf32> to vector<1x8x8xf32>
    %64 = arith.mulf %59, %63 : vector<1x8x8xf32>
    %65 = vector.extract_strided_slice %48 {offsets = [0, 0, 0], sizes = [1, 8, 8], strides = [1, 1, 1]} : vector<1x8x32xf32> to vector<1x8x8xf32>
    "tpu.trace_start"() <{level = 10 : i32, message = "bqk,bkd->bqd"}> : () -> ()
    %cst_28 = arith.constant dense<0.000000e+00> : vector<1x8x8xf32>
    %66 = tpu.matmul %64, %65, %cst_28 {dimension_numbers = #tpu.dot_dimension_numbers<[2], [1], [1], [2], [0, 0, 0, 1, 1, 2], [0], [0]>} : vector<1x8x8xf32>, vector<1x8x8xf32>, vector<1x8x8xf32> -> vector<1x8x8xf32>
    "tpu.trace_stop"() : () -> ()
    %67 = vector.shape_cast %66 : vector<1x8x8xf32> to vector<8x8xf32>
    %68 = vector.extract_strided_slice %50 {offsets = [0, 0], sizes = [8, 32], strides = [1, 1]} : vector<32x32xf32> to vector<8x32xf32>
    %cst_29 = arith.constant dense<0.000000e+00> : vector<8x32xf32>
    %69 = tpu.matmul %67, %68, %cst_29 {dimension_numbers = #tpu.dot_dimension_numbers<[1], [0], [0], [1], [0, 0, 1, 1], [], []>} : vector<8x8xf32>, vector<8x32xf32>, vector<8x32xf32> -> vector<8x32xf32>
    %70 = arith.addf %51, %69 : vector<8x32xf32>
    %71 = vector.extract_strided_slice %44 {offsets = [0, 0, 8], sizes = [1, 8, 8], strides = [1, 1, 1]} : vector<1x8x32xf32> to vector<1x8x8xf32>
    %72 = vector.extract_strided_slice %46 {offsets = [0, 0, 8], sizes = [1, 8, 8], strides = [1, 1, 1]} : vector<1x8x32xf32> to vector<1x8x8xf32>
    "tpu.trace_start"() <{level = 10 : i32, message = "bqd,bkd->bqk"}> : () -> ()
    %cst_30 = arith.constant dense<0.000000e+00> : vector<1x8x8xf32>
    %73 = tpu.matmul %71, %72, %cst_30 {dimension_numbers = #tpu.dot_dimension_numbers<[2], [2], [1], [1], [0, 0, 0, 1, 1, 1], [0], [0]>} : vector<1x8x8xf32>, vector<1x8x8xf32>, vector<1x8x8xf32> -> vector<1x8x8xf32>
    "tpu.trace_stop"() : () -> ()
    %cst_31 = arith.constant dense<0xFF800000> : vector<1x8xf32>
    %74 = vector.multi_reduction <maximumf>, %73, %cst_31 [2] : vector<1x8x8xf32> to vector<1x8xf32>
    %75 = vector.shape_cast %74 : vector<1x8xf32> to vector<1x8x1xf32>
    %76 = vector.broadcast %75 : vector<1x8x1xf32> to vector<1x8x8xf32>
    %77 = arith.subf %73, %76 : vector<1x8x8xf32>
    %78 = math.exp %77 : vector<1x8x8xf32>
    %cst_32 = arith.constant dense<0.000000e+00> : vector<1x8xf32>
    %79 = vector.multi_reduction <add>, %78, %cst_32 [2] : vector<1x8x8xf32> to vector<1x8xf32>
    %80 = vector.shape_cast %79 : vector<1x8xf32> to vector<1x8x1xf32>
    %81 = tpu.reciprocal %80 {approx = true} : vector<1x8x1xf32> -> vector<1x8x1xf32>
    %82 = vector.broadcast %81 : vector<1x8x1xf32> to vector<1x8x8xf32>
    %83 = arith.mulf %78, %82 : vector<1x8x8xf32>
    %84 = vector.extract_strided_slice %48 {offsets = [0, 0, 8], sizes = [1, 8, 8], strides = [1, 1, 1]} : vector<1x8x32xf32> to vector<1x8x8xf32>
    "tpu.trace_start"() <{level = 10 : i32, message = "bqk,bkd->bqd"}> : () -> ()
    %cst_33 = arith.constant dense<0.000000e+00> : vector<1x8x8xf32>
    %85 = tpu.matmul %83, %84, %cst_33 {dimension_numbers = #tpu.dot_dimension_numbers<[2], [1], [1], [2], [0, 0, 0, 1, 1, 2], [0], [0]>} : vector<1x8x8xf32>, vector<1x8x8xf32>, vector<1x8x8xf32> -> vector<1x8x8xf32>
    "tpu.trace_stop"() : () -> ()
    %86 = vector.shape_cast %85 : vector<1x8x8xf32> to vector<8x8xf32>
    %87 = vector.extract_strided_slice %50 {offsets = [8, 0], sizes = [8, 32], strides = [1, 1]} : vector<32x32xf32> to vector<8x32xf32>
    %cst_34 = arith.constant dense<0.000000e+00> : vector<8x32xf32>
    %88 = tpu.matmul %86, %87, %cst_34 {dimension_numbers = #tpu.dot_dimension_numbers<[1], [0], [0], [1], [0, 0, 1, 1], [], []>} : vector<8x8xf32>, vector<8x32xf32>, vector<8x32xf32> -> vector<8x32xf32>
    %89 = arith.addf %70, %88 : vector<8x32xf32>
    %90 = vector.extract_strided_slice %44 {offsets = [0, 0, 16], sizes = [1, 8, 8], strides = [1, 1, 1]} : vector<1x8x32xf32> to vector<1x8x8xf32>
    %91 = vector.extract_strided_slice %46 {offsets = [0, 0, 16], sizes = [1, 8, 8], strides = [1, 1, 1]} : vector<1x8x32xf32> to vector<1x8x8xf32>
    "tpu.trace_start"() <{level = 10 : i32, message = "bqd,bkd->bqk"}> : () -> ()
    %cst_35 = arith.constant dense<0.000000e+00> : vector<1x8x8xf32>
    %92 = tpu.matmul %90, %91, %cst_35 {dimension_numbers = #tpu.dot_dimension_numbers<[2], [2], [1], [1], [0, 0, 0, 1, 1, 1], [0], [0]>} : vector<1x8x8xf32>, vector<1x8x8xf32>, vector<1x8x8xf32> -> vector<1x8x8xf32>
    "tpu.trace_stop"() : () -> ()
    %cst_36 = arith.constant dense<0xFF800000> : vector<1x8xf32>
    %93 = vector.multi_reduction <maximumf>, %92, %cst_36 [2] : vector<1x8x8xf32> to vector<1x8xf32>
    %94 = vector.shape_cast %93 : vector<1x8xf32> to vector<1x8x1xf32>
    %95 = vector.broadcast %94 : vector<1x8x1xf32> to vector<1x8x8xf32>
    %96 = arith.subf %92, %95 : vector<1x8x8xf32>
    %97 = math.exp %96 : vector<1x8x8xf32>
    %cst_37 = arith.constant dense<0.000000e+00> : vector<1x8xf32>
    %98 = vector.multi_reduction <add>, %97, %cst_37 [2] : vector<1x8x8xf32> to vector<1x8xf32>
    %99 = vector.shape_cast %98 : vector<1x8xf32> to vector<1x8x1xf32>
    %100 = tpu.reciprocal %99 {approx = true} : vector<1x8x1xf32> -> vector<1x8x1xf32>
    %101 = vector.broadcast %100 : vector<1x8x1xf32> to vector<1x8x8xf32>
    %102 = arith.mulf %97, %101 : vector<1x8x8xf32>
    %103 = vector.extract_strided_slice %48 {offsets = [0, 0, 16], sizes = [1, 8, 8], strides = [1, 1, 1]} : vector<1x8x32xf32> to vector<1x8x8xf32>
    "tpu.trace_start"() <{level = 10 : i32, message = "bqk,bkd->bqd"}> : () -> ()
    %cst_38 = arith.constant dense<0.000000e+00> : vector<1x8x8xf32>
    %104 = tpu.matmul %102, %103, %cst_38 {dimension_numbers = #tpu.dot_dimension_numbers<[2], [1], [1], [2], [0, 0, 0, 1, 1, 2], [0], [0]>} : vector<1x8x8xf32>, vector<1x8x8xf32>, vector<1x8x8xf32> -> vector<1x8x8xf32>
    "tpu.trace_stop"() : () -> ()
    %105 = vector.shape_cast %104 : vector<1x8x8xf32> to vector<8x8xf32>
    %106 = vector.extract_strided_slice %50 {offsets = [16, 0], sizes = [8, 32], strides = [1, 1]} : vector<32x32xf32> to vector<8x32xf32>
    %cst_39 = arith.constant dense<0.000000e+00> : vector<8x32xf32>
    %107 = tpu.matmul %105, %106, %cst_39 {dimension_numbers = #tpu.dot_dimension_numbers<[1], [0], [0], [1], [0, 0, 1, 1], [], []>} : vector<8x8xf32>, vector<8x32xf32>, vector<8x32xf32> -> vector<8x32xf32>
    %108 = arith.addf %89, %107 : vector<8x32xf32>
    %109 = vector.extract_strided_slice %44 {offsets = [0, 0, 24], sizes = [1, 8, 8], strides = [1, 1, 1]} : vector<1x8x32xf32> to vector<1x8x8xf32>
    %110 = vector.extract_strided_slice %46 {offsets = [0, 0, 24], sizes = [1, 8, 8], strides = [1, 1, 1]} : vector<1x8x32xf32> to vector<1x8x8xf32>
    "tpu.trace_start"() <{level = 10 : i32, message = "bqd,bkd->bqk"}> : () -> ()
    %cst_40 = arith.constant dense<0.000000e+00> : vector<1x8x8xf32>
    %111 = tpu.matmul %109, %110, %cst_40 {dimension_numbers = #tpu.dot_dimension_numbers<[2], [2], [1], [1], [0, 0, 0, 1, 1, 1], [0], [0]>} : vector<1x8x8xf32>, vector<1x8x8xf32>, vector<1x8x8xf32> -> vector<1x8x8xf32>
    "tpu.trace_stop"() : () -> ()
    %cst_41 = arith.constant dense<0xFF800000> : vector<1x8xf32>
    %112 = vector.multi_reduction <maximumf>, %111, %cst_41 [2] : vector<1x8x8xf32> to vector<1x8xf32>
    %113 = vector.shape_cast %112 : vector<1x8xf32> to vector<1x8x1xf32>
    %114 = vector.broadcast %113 : vector<1x8x1xf32> to vector<1x8x8xf32>
    %115 = arith.subf %111, %114 : vector<1x8x8xf32>
    %116 = math.exp %115 : vector<1x8x8xf32>
    %cst_42 = arith.constant dense<0.000000e+00> : vector<1x8xf32>
    %117 = vector.multi_reduction <add>, %116, %cst_42 [2] : vector<1x8x8xf32> to vector<1x8xf32>
    %118 = vector.shape_cast %117 : vector<1x8xf32> to vector<1x8x1xf32>
    %119 = tpu.reciprocal %118 {approx = true} : vector<1x8x1xf32> -> vector<1x8x1xf32>
    %120 = vector.broadcast %119 : vector<1x8x1xf32> to vector<1x8x8xf32>
    %121 = arith.mulf %116, %120 : vector<1x8x8xf32>
    %122 = vector.extract_strided_slice %48 {offsets = [0, 0, 24], sizes = [1, 8, 8], strides = [1, 1, 1]} : vector<1x8x32xf32> to vector<1x8x8xf32>
    "tpu.trace_start"() <{level = 10 : i32, message = "bqk,bkd->bqd"}> : () -> ()
    %cst_43 = arith.constant dense<0.000000e+00> : vector<1x8x8xf32>
    %123 = tpu.matmul %121, %122, %cst_43 {dimension_numbers = #tpu.dot_dimension_numbers<[2], [1], [1], [2], [0, 0, 0, 1, 1, 2], [0], [0]>} : vector<1x8x8xf32>, vector<1x8x8xf32>, vector<1x8x8xf32> -> vector<1x8x8xf32>
    "tpu.trace_stop"() : () -> ()
    %124 = vector.shape_cast %123 : vector<1x8x8xf32> to vector<8x8xf32>
    %125 = vector.extract_strided_slice %50 {offsets = [24, 0], sizes = [8, 32], strides = [1, 1]} : vector<32x32xf32> to vector<8x32xf32>
    %cst_44 = arith.constant dense<0.000000e+00> : vector<8x32xf32>
    %126 = tpu.matmul %124, %125, %cst_44 {dimension_numbers = #tpu.dot_dimension_numbers<[1], [0], [0], [1], [0, 0, 1, 1], [], []>} : vector<8x8xf32>, vector<8x32xf32>, vector<8x32xf32> -> vector<8x32xf32>
    %127 = arith.addf %108, %126 : vector<8x32xf32>
    %128 = arith.addf %4, %127 : vector<8x32xf32>
    %c0_45 = arith.constant 0 : index
    %c0_46 = arith.constant 0 : index
    %c0_47 = arith.constant 0 : index
    %129 = vector.load %arg8[%c0_45, %c0_46, %c0_47] : memref<1x1x32xf32, #tpu.memory_space<vmem>>, vector<1x1x32xf32>
    %130 = vector.shape_cast %129 : vector<1x1x32xf32> to vector<32xf32>
    %131 = vector.shape_cast %130 : vector<32xf32> to vector<1x32xf32>
    %132 = vector.broadcast %131 : vector<1x32xf32> to vector<8x32xf32>
    %133 = arith.addf %128, %132 : vector<8x32xf32>
    %c0_48 = arith.constant 0 : index
    %c0_49 = arith.constant 0 : index
    %c0_50 = arith.constant 0 : index
    %134 = vector.load %arg9[%c0_48, %c0_49, %c0_50] : memref<1x1x32xf32, #tpu.memory_space<vmem>>, vector<1x1x32xf32>
    %135 = vector.shape_cast %134 : vector<1x1x32xf32> to vector<32xf32>
    %c0_51 = arith.constant 0 : index
    %c0_52 = arith.constant 0 : index
    %c0_53 = arith.constant 0 : index
    %136 = vector.load %arg10[%c0_51, %c0_52, %c0_53] : memref<1x1x32xf32, #tpu.memory_space<vmem>>, vector<1x1x32xf32>
    %137 = vector.shape_cast %136 : vector<1x1x32xf32> to vector<32xf32>
    %cst_54 = arith.constant dense<0.000000e+00> : vector<8xf32>
    %138 = vector.multi_reduction <add>, %133, %cst_54 [1] : vector<8x32xf32> to vector<8xf32>
    %139 = vector.shape_cast %138 : vector<8xf32> to vector<8x1xf32>
    %cst_55 = arith.constant 3.200000e+01 : f32
    %140 = vector.broadcast %cst_55 : f32 to vector<8x1xf32>
    %141 = arith.divf %139, %140 : vector<8x1xf32>
    %142 = vector.broadcast %141 : vector<8x1xf32> to vector<8x32xf32>
    %143 = arith.subf %133, %142 : vector<8x32xf32>
    %144 = arith.mulf %143, %143 : vector<8x32xf32>
    %cst_56 = arith.constant dense<0.000000e+00> : vector<8xf32>
    %145 = vector.multi_reduction <add>, %144, %cst_56 [1] : vector<8x32xf32> to vector<8xf32>
    %146 = vector.shape_cast %145 : vector<8xf32> to vector<8x1xf32>
    %cst_57 = arith.constant 3.200000e+01 : f32
    %147 = vector.broadcast %cst_57 : f32 to vector<8x1xf32>
    %148 = arith.divf %146, %147 : vector<8x1xf32>
    %149 = vector.broadcast %141 : vector<8x1xf32> to vector<8x32xf32>
    %150 = arith.subf %133, %149 : vector<8x32xf32>
    %cst_58 = arith.constant 9.99999974E-6 : f32
    %151 = vector.broadcast %cst_58 : f32 to vector<8x1xf32>
    %152 = arith.addf %148, %151 : vector<8x1xf32>
    %153 = math.rsqrt %152 : vector<8x1xf32>
    %154 = vector.broadcast %153 : vector<8x1xf32> to vector<8x32xf32>
    %155 = arith.mulf %150, %154 : vector<8x32xf32>
    %156 = vector.shape_cast %135 : vector<32xf32> to vector<1x32xf32>
    %157 = vector.broadcast %156 : vector<1x32xf32> to vector<8x32xf32>
    %158 = arith.mulf %155, %157 : vector<8x32xf32>
    %159 = vector.shape_cast %137 : vector<32xf32> to vector<1x32xf32>
    %160 = vector.broadcast %159 : vector<1x32xf32> to vector<8x32xf32>
    %161 = arith.addf %158, %160 : vector<8x32xf32>
    %c0_59 = arith.constant 0 : index
    %c0_60 = arith.constant 0 : index
    %c0_61 = arith.constant 0 : index
    %162 = vector.load %arg11[%c0_59, %c0_60, %c0_61] : memref<1x32x128xf32, #tpu.memory_space<vmem>>, vector<1x32x128xf32>
    %163 = vector.shape_cast %162 : vector<1x32x128xf32> to vector<32x128xf32>
    %cst_62 = arith.constant dense<0.000000e+00> : vector<8x128xf32>
    %164 = tpu.matmul %161, %163, %cst_62 {dimension_numbers = #tpu.dot_dimension_numbers<[1], [0], [0], [1], [0, 0, 1, 1], [], []>} : vector<8x32xf32>, vector<32x128xf32>, vector<8x128xf32> -> vector<8x128xf32>
    %c0_63 = arith.constant 0 : index
    %c0_64 = arith.constant 0 : index
    %c0_65 = arith.constant 0 : index
    %165 = vector.load %arg12[%c0_63, %c0_64, %c0_65] : memref<1x1x128xf32, #tpu.memory_space<vmem>>, vector<1x1x128xf32>
    %166 = vector.shape_cast %165 : vector<1x1x128xf32> to vector<128xf32>
    %167 = vector.shape_cast %166 : vector<128xf32> to vector<1x128xf32>
    %168 = vector.broadcast %167 : vector<1x128xf32> to vector<8x128xf32>
    %169 = arith.addf %164, %168 : vector<8x128xf32>
    %cst_66 = arith.constant 1.702000e+00 : f32
    %170 = vector.broadcast %cst_66 : f32 to vector<8x128xf32>
    %171 = arith.mulf %170, %169 : vector<8x128xf32>
    %172 = arith.negf %171 : vector<8x128xf32>
    %173 = math.exp %172 : vector<8x128xf32>
    %cst_67 = arith.constant 1.000000e+00 : f32
    %174 = vector.broadcast %cst_67 : f32 to vector<8x128xf32>
    %175 = arith.addf %174, %173 : vector<8x128xf32>
    %176 = arith.divf %174, %175 : vector<8x128xf32>
    %177 = arith.mulf %169, %176 : vector<8x128xf32>
    %c0_68 = arith.constant 0 : index
    %c0_69 = arith.constant 0 : index
    %c0_70 = arith.constant 0 : index
    %178 = vector.load %arg13[%c0_68, %c0_69, %c0_70] : memref<1x128x32xf32, #tpu.memory_space<vmem>>, vector<1x128x32xf32>
    %179 = vector.shape_cast %178 : vector<1x128x32xf32> to vector<128x32xf32>
    %cst_71 = arith.constant dense<0.000000e+00> : vector<8x32xf32>
    %180 = tpu.matmul %177, %179, %cst_71 {dimension_numbers = #tpu.dot_dimension_numbers<[1], [0], [0], [1], [0, 0, 1, 1], [], []>} : vector<8x128xf32>, vector<128x32xf32>, vector<8x32xf32> -> vector<8x32xf32>
    %c0_72 = arith.constant 0 : index
    %c0_73 = arith.constant 0 : index
    %c0_74 = arith.constant 0 : index
    %181 = vector.load %arg14[%c0_72, %c0_73, %c0_74] : memref<1x1x32xf32, #tpu.memory_space<vmem>>, vector<1x1x32xf32>
    %182 = vector.shape_cast %181 : vector<1x1x32xf32> to vector<32xf32>
    %183 = vector.shape_cast %182 : vector<32xf32> to vector<1x32xf32>
    %184 = vector.broadcast %183 : vector<1x32xf32> to vector<8x32xf32>
    %185 = arith.addf %180, %184 : vector<8x32xf32>
    %186 = arith.addf %133, %185 : vector<8x32xf32>
    %187 = vector.shape_cast %186 : vector<8x32xf32> to vector<1x8x32xf32>
    %c0_75 = arith.constant 0 : index
    %c0_76 = arith.constant 0 : index
    %c0_77 = arith.constant 0 : index
    %188 = vector.load %arg15[%c0_75, %c0_76, %c0_77] : memref<1x8x32xf32, #tpu.memory_space<vmem>>, vector<1x8x32xf32>
    tpu.vector_store %arg15[%c0_75, %c0_76, %c0_77], %187 {strides = array<i32>} : memref<1x8x32xf32, #tpu.memory_space<vmem>>, vector<1x8x32xf32>,
    return
  }
  func.func @transform_0(%arg0: i32, %arg1: i32) -> (i32, i32, i32) {
    %c0_i32 = arith.constant 0 : i32
    %c0_i32_0 = arith.constant 0 : i32
    %c0_i32_1 = arith.constant 0 : i32
    return %arg0, %c0_i32, %c0_i32_0 : i32, i32, i32
  }
  func.func @transform_1(%arg0: i32, %arg1: i32) -> (i32, i32, i32) {
    %c0_i32 = arith.constant 0 : i32
    %c0_i32_0 = arith.constant 0 : i32
    %c0_i32_1 = arith.constant 0 : i32
    return %arg1, %c0_i32, %c0_i32_0 : i32, i32, i32
  }
  func.func @transform_2(%arg0: i32, %arg1: i32) -> (i32, i32, i32) {
    %c0_i32 = arith.constant 0 : i32
    %c0_i32_0 = arith.constant 0 : i32
    %c0_i32_1 = arith.constant 0 : i32
    return %arg1, %c0_i32, %c0_i32_0 : i32, i32, i32
  }
  func.func @transform_3(%arg0: i32, %arg1: i32) -> (i32, i32, i32) {
    %c0_i32 = arith.constant 0 : i32
    %c0_i32_0 = arith.constant 0 : i32
    %c0_i32_1 = arith.constant 0 : i32
    return %arg1, %c0_i32, %c0_i32_0 : i32, i32, i32
  }
  func.func @transform_4(%arg0: i32, %arg1: i32) -> (i32, i32, i32) {
    %c0_i32 = arith.constant 0 : i32
    %c0_i32_0 = arith.constant 0 : i32
    %c0_i32_1 = arith.constant 0 : i32
    return %arg1, %c0_i32, %c0_i32_0 : i32, i32, i32
  }
  func.func @transform_5(%arg0: i32, %arg1: i32) -> (i32, i32, i32) {
    %c0_i32 = arith.constant 0 : i32
    %c0_i32_0 = arith.constant 0 : i32
    %c0_i32_1 = arith.constant 0 : i32
    return %arg1, %c0_i32, %c0_i32_0 : i32, i32, i32
  }
  func.func @transform_6(%arg0: i32, %arg1: i32) -> (i32, i32, i32) {
    %c0_i32 = arith.constant 0 : i32
    %c0_i32_0 = arith.constant 0 : i32
    %c0_i32_1 = arith.constant 0 : i32
    return %arg1, %c0_i32, %c0_i32_0 : i32, i32, i32
  }
  func.func @transform_7(%arg0: i32, %arg1: i32) -> (i32, i32, i32) {
    %c0_i32 = arith.constant 0 : i32
    %c0_i32_0 = arith.constant 0 : i32
    %c0_i32_1 = arith.constant 0 : i32
    return %arg1, %c0_i32, %c0_i32_0 : i32, i32, i32
  }
  func.func @transform_8(%arg0: i32, %arg1: i32) -> (i32, i32, i32) {
    %c0_i32 = arith.constant 0 : i32
    %c0_i32_0 = arith.constant 0 : i32
    %c0_i32_1 = arith.constant 0 : i32
    return %arg1, %c0_i32, %c0_i32_0 : i32, i32, i32
  }
  func.func @transform_9(%arg0: i32, %arg1: i32) -> (i32, i32, i32) {
    %c0_i32 = arith.constant 0 : i32
    %c0_i32_0 = arith.constant 0 : i32
    %c0_i32_1 = arith.constant 0 : i32
    return %arg1, %c0_i32, %c0_i32_0 : i32, i32, i32
  }
  func.func @transform_10(%arg0: i32, %arg1: i32) -> (i32, i32, i32) {
    %c0_i32 = arith.constant 0 : i32
    %c0_i32_0 = arith.constant 0 : i32
    %c0_i32_1 = arith.constant 0 : i32
    return %arg1, %c0_i32, %c0_i32_0 : i32, i32, i32
  }
  func.func @transform_11(%arg0: i32, %arg1: i32) -> (i32, i32, i32) {
    %c0_i32 = arith.constant 0 : i32
    %c0_i32_0 = arith.constant 0 : i32
    %c0_i32_1 = arith.constant 0 : i32
    return %arg1, %c0_i32, %c0_i32_0 : i32, i32, i32
  }
  func.func @transform_12(%arg0: i32, %arg1: i32) -> (i32, i32, i32) {
    %c0_i32 = arith.constant 0 : i32
    %c0_i32_0 = arith.constant 0 : i32
    %c0_i32_1 = arith.constant 0 : i32
    return %arg1, %c0_i32, %c0_i32_0 : i32, i32, i32
  }
  func.func @transform_13(%arg0: i32, %arg1: i32) -> (i32, i32, i32) {
    %c0_i32 = arith.constant 0 : i32
    %c0_i32_0 = arith.constant 0 : i32
    %c0_i32_1 = arith.constant 0 : i32
    return %arg0, %c0_i32, %c0_i32_0 : i32, i32, i32
  }
}

</mosaic_0001>

<llo_original>
// kernel: tpu_custom_call.1
$region0: #{tpu_custom_call.1}
  #allocation0 [shape = 'u32[]', space=smem, size = 0x4, offset = 0x4, fixed_abs, tag = 'smem constant byte address 0x4 - core index']
  #allocation1 [shape = 'u32[144,128]{1,0:T(1,128)}', space=vmem, size = 0x12000, scoped, tag = 'internal scratch']
  %s0 = inlined_call_operand.hbm [shape: f32[2,8,32], index: 0, kind: input, shape index: {}, may-alias: {0,13}]
  %s1 = inlined_call_operand.vmem [shape: f32[2,1,32], index: 1, kind: input, shape index: {}]
  %s2 = inlined_call_operand.vmem [shape: f32[2,1,32], index: 2, kind: input, shape index: {}]
  %s3 = inlined_call_operand.vmem [shape: f32[2,32,96], index: 3, kind: input, shape index: {}]
  %s4 = inlined_call_operand.vmem [shape: f32[2,1,96], index: 4, kind: input, shape index: {}]
  %s5 = inlined_call_operand.vmem [shape: f32[2,32,32], index: 5, kind: input, shape index: {}]
  %s6 = inlined_call_operand.vmem [shape: f32[2,1,32], index: 6, kind: input, shape index: {}]
  %s7 = inlined_call_operand.vmem [shape: f32[2,1,32], index: 7, kind: input, shape index: {}]
  %s8 = inlined_call_operand.vmem [shape: f32[2,1,32], index: 8, kind: input, shape index: {}]
  %s9 = inlined_call_operand.vmem [shape: f32[2,32,128], index: 9, kind: input, shape index: {}]
  %s10 = inlined_call_operand.vmem [shape: f32[2,1,128], index: 10, kind: input, shape index: {}]
  %s11 = inlined_call_operand.vmem [shape: f32[2,128,32], index: 11, kind: input, shape index: {}]
  %s12 = inlined_call_operand.vmem [shape: f32[2,1,32], index: 12, kind: input, shape index: {}]
  %s13 = inlined_call_operand.hbm [shape: f32[2,8,32], index: 13, kind: output, shape index: {}, may-alias: {0,13}]
  %s14 = sld [smem:[#allocation0]]
  $region93: #{tpu_custom_call.1} parent=0
    _
  %s16 = ssub.s32 1, %s14
  %s17 = scalar_select 0, %s16, %s14
  $region1: #{tpu_custom_call.1} parent=0
    #allocation2 [shape = 'u8[8192]{0}', space=vmem, size = 0x2000, scoped, tag = 'input window, operand 0']
    #allocation3 [shape = 's32[2]{0}', space=sflag, size = 0x8, scoped, tag = 'scoped memory for tpu_custom_call.1']
    #allocation4 [shape = 's32[2]{0}', space=sflag, size = 0x8, scoped, tag = 'scoped memory for tpu_custom_call.1']
    #allocation5 [shape = 'u8[8192]{0}', space=vmem, size = 0x2000, scoped, tag = 'output window, operand 0']
    %18 = vsyncpa [#allocation3], 0
    %s19 = scalar_lea.sflag [#allocation3], 1
    %20 = vsyncpa %s19, 0
    %21 = vsyncpa [#allocation4], 0
    %s22 = scalar_lea.sflag [#allocation4], 1
    %23 = vsyncpa %s22, 0
    loop: start=0, step=1, limit=6
    $region2: #{tpu_custom_call.1} parent=1 // loop_pre_header
      _
    $region3: #{tpu_custom_call.1} parent=1 // loop_header
      %s25 = sphi 0, %s29
      %p26 = scmp.ge.s32.totalorder %s25, 6
      %s32 = sphi 0, %s44
      %s33 = sphi 0, %s40
      %s34 = sphi 0, %s32
      %s35 = sphi 0, %s33
      %s36 = sphi 0, %s34
      %s37 = sphi 0, %s35
      %s47 = sphi 0, %s49
      %s50 = sphi 0, %s47
      %s51 = sphi 0, %s50
      %s67 = sphi 0, %s51
      %s73 = sphi 0, %s75
      %s76 = sphi 0, %s73
      %s77 = sphi 0, %s76
      %s93 = sphi 0, %s77
      %s99 = sphi 0, %s101
      %s102 = sphi 0, %s99
      %s103 = sphi 0, %s102
      %s119 = sphi 0, %s103
      %s125 = sphi 0, %s127
      %s128 = sphi 0, %s125
      %s129 = sphi 0, %s128
      %s145 = sphi 0, %s129
      %s151 = sphi 0, %s153
      %s154 = sphi 0, %s151
      %s155 = sphi 0, %s154
      %s171 = sphi 0, %s155
      %s177 = sphi 0, %s179
      %s180 = sphi 0, %s177
      %s181 = sphi 0, %s180
      %s197 = sphi 0, %s181
      %s203 = sphi 0, %s205
      %s206 = sphi 0, %s203
      %s207 = sphi 0, %s206
      %s223 = sphi 0, %s207
      %s229 = sphi 0, %s231
      %s232 = sphi 0, %s229
      %s233 = sphi 0, %s232
      %s249 = sphi 0, %s233
      %s255 = sphi 0, %s257
      %s258 = sphi 0, %s255
      %s259 = sphi 0, %s258
      %s275 = sphi 0, %s259
      %s281 = sphi 0, %s283
      %s284 = sphi 0, %s281
      %s285 = sphi 0, %s284
      %s301 = sphi 0, %s285
      %s307 = sphi 0, %s309
      %s310 = sphi 0, %s307
      %s311 = sphi 0, %s310
      %s327 = sphi 0, %s311
      %s333 = sphi 0, %s335
      %s336 = sphi 0, %s333
      %s337 = sphi 0, %s336
      %s353 = sphi 0, %s337
      %s359 = sphi 0, %s361
      %s362 = sphi 0, %s359
      %s363 = sphi 0, %s362
      %s379 = sphi 0, %s363
      %s385 = sphi 0, %s387
      %s388 = sphi 0, %s385
      %s389 = sphi 0, %s388
      %s405 = sphi 0, %s389
    $region4: #{tpu_custom_call.1} parent=1 // loop_header_branch
      %28 = sbr.rel (%p26) target = $region8
    $region5: #{tpu_custom_call.1} parent=1 // loop_body
      %s30 = ssub.s32 %s25, 1
      %s31 = ssub.s32 %s25, 2
      %s38 = sadd.s32 1, %s33
      %p39 = scmp.ge.s32.totalorder %s38, 2
      %s40 = scalar_select %p39, 0, %s38
      %s41 = sadd.s32 1, %s32
      %s42 = scalar_select %p39, %s41, %s32
      %p43 = scmp.ge.s32.totalorder %s42, 2
      %s44 = scalar_select %p43, 0, %s42
      %s45 = ssub.s32 %s32, %s44
      %p46 = scmp.eq.s32.totalorder %s45, 0
      %s48 = sadd.s32 %s47, 1
      %s49 = scalar_select %p46, %s47, %s48
      %p52 = pneg %p46
      %p53 = scmp.eq.s32.totalorder %s25, 3
      %p54 = por %p52, %p53
      %p55 = scmp.ne.s32.totalorder %s47, %s50
      %p56 = scmp.eq.s32.totalorder %s25, 0
      %p57 = por %p55, %p56
      %p58 = scmp.ne.s32.totalorder %s47, %s50
      %p59 = scmp.eq.s32.totalorder %s30, 3
      %p60 = por %p58, %p59
      %p61 = scmp.ne.s32.totalorder %s50, %s51
      %p62 = scmp.eq.s32.totalorder %s30, 0
      %p63 = por %p61, %p62
      %p64 = scmp.ne.s32.totalorder %s50, %s51
      %p65 = scmp.eq.s32.totalorder %s31, 3
      %p66 = por %p64, %p65
      %p68 = scmp.ne.s32.totalorder %s51, %s67
      %p69 = scmp.eq.s32.totalorder %s31, 0
      %p70 = por %p68, %p69
      %s71 = ssub.s32 %s33, %s40
      %p72 = scmp.eq.s32.totalorder %s71, 0
      %s74 = sadd.s32 %s73, 1
      %s75 = scalar_select %p72, %s73, %s74
      %p78 = pneg %p72
      %p79 = scmp.eq.s32.totalorder %s25, 3
      %p80 = por %p78, %p79
      %p81 = scmp.ne.s32.totalorder %s73, %s76
      %p82 = scmp.eq.s32.totalorder %s25, 0
      %p83 = por %p81, %p82
      %p84 = scmp.ne.s32.totalorder %s73, %s76
      %p85 = scmp.eq.s32.totalorder %s30, 3
      %p86 = por %p84, %p85
      %p87 = scmp.ne.s32.totalorder %s76, %s77
      %p88 = scmp.eq.s32.totalorder %s30, 0
      %p89 = por %p87, %p88
      %p90 = scmp.ne.s32.totalorder %s76, %s77
      %p91 = scmp.eq.s32.totalorder %s31, 3
      %p92 = por %p90, %p91
      %p94 = scmp.ne.s32.totalorder %s77, %s93
      %p95 = scmp.eq.s32.totalorder %s31, 0
      %p96 = por %p94, %p95
      %s97 = ssub.s32 %s33, %s40
      %p98 = scmp.eq.s32.totalorder %s97, 0
      %s100 = sadd.s32 %s99, 1
      %s101 = scalar_select %p98, %s99, %s100
      %p104 = pneg %p98
      %p105 = scmp.eq.s32.totalorder %s25, 3
      %p106 = por %p104, %p105
      %p107 = scmp.ne.s32.totalorder %s99, %s102
      %p108 = scmp.eq.s32.totalorder %s25, 0
      %p109 = por %p107, %p108
      %p110 = scmp.ne.s32.totalorder %s99, %s102
      %p111 = scmp.eq.s32.totalorder %s30, 3
      %p112 = por %p110, %p111
      %p113 = scmp.ne.s32.totalorder %s102, %s103
      %p114 = scmp.eq.s32.totalorder %s30, 0
      %p115 = por %p113, %p114
      %p116 = scmp.ne.s32.totalorder %s102, %s103
      %p117 = scmp.eq.s32.totalorder %s31, 3
      %p118 = por %p116, %p117
      %p120 = scmp.ne.s32.totalorder %s103, %s119
      %p121 = scmp.eq.s32.totalorder %s31, 0
      %p122 = por %p120, %p121
      %s123 = ssub.s32 %s33, %s40
      %p124 = scmp.eq.s32.totalorder %s123, 0
      %s126 = sadd.s32 %s125, 1
      %s127 = scalar_select %p124, %s125, %s126
      %p130 = pneg %p124
      %p131 = scmp.eq.s32.totalorder %s25, 3
      %p132 = por %p130, %p131
      %p133 = scmp.ne.s32.totalorder %s125, %s128
      %p134 = scmp.eq.s32.totalorder %s25, 0
      %p135 = por %p133, %p134
      %p136 = scmp.ne.s32.totalorder %s125, %s128
      %p137 = scmp.eq.s32.totalorder %s30, 3
      %p138 = por %p136, %p137
      %p139 = scmp.ne.s32.totalorder %s128, %s129
      %p140 = scmp.eq.s32.totalorder %s30, 0
      %p141 = por %p139, %p140
      %p142 = scmp.ne.s32.totalorder %s128, %s129
      %p143 = scmp.eq.s32.totalorder %s31, 3
      %p144 = por %p142, %p143
      %p146 = scmp.ne.s32.totalorder %s129, %s145
      %p147 = scmp.eq.s32.totalorder %s31, 0
      %p148 = por %p146, %p147
      %s149 = ssub.s32 %s33, %s40
      %p150 = scmp.eq.s32.totalorder %s149, 0
      %s152 = sadd.s32 %s151, 1
      %s153 = scalar_select %p150, %s151, %s152
      %p156 = pneg %p150
      %p157 = scmp.eq.s32.totalorder %s25, 3
      %p158 = por %p156, %p157
      %p159 = scmp.ne.s32.totalorder %s151, %s154
      %p160 = scmp.eq.s32.totalorder %s25, 0
      %p161 = por %p159, %p160
      %p162 = scmp.ne.s32.totalorder %s151, %s154
      %p163 = scmp.eq.s32.totalorder %s30, 3
      %p164 = por %p162, %p163
      %p165 = scmp.ne.s32.totalorder %s154, %s155
      %p166 = scmp.eq.s32.totalorder %s30, 0
      %p167 = por %p165, %p166
      %p168 = scmp.ne.s32.totalorder %s154, %s155
      %p169 = scmp.eq.s32.totalorder %s31, 3
      %p170 = por %p168, %p169
      %p172 = scmp.ne.s32.totalorder %s155, %s171
      %p173 = scmp.eq.s32.totalorder %s31, 0
      %p174 = por %p172, %p173
      %s175 = ssub.s32 %s33, %s40
      %p176 = scmp.eq.s32.totalorder %s175, 0
      %s178 = sadd.s32 %s177, 1
      %s179 = scalar_select %p176, %s177, %s178
      %p182 = pneg %p176
      %p183 = scmp.eq.s32.totalorder %s25, 3
      %p184 = por %p182, %p183
      %p185 = scmp.ne.s32.totalorder %s177, %s180
      %p186 = scmp.eq.s32.totalorder %s25, 0
      %p187 = por %p185, %p186
      %p188 = scmp.ne.s32.totalorder %s177, %s180
      %p189 = scmp.eq.s32.totalorder %s30, 3
      %p190 = por %p188, %p189
      %p191 = scmp.ne.s32.totalorder %s180, %s181
      %p192 = scmp.eq.s32.totalorder %s30, 0
      %p193 = por %p191, %p192
      %p194 = scmp.ne.s32.totalorder %s180, %s181
      %p195 = scmp.eq.s32.totalorder %s31, 3
      %p196 = por %p194, %p195
      %p198 = scmp.ne.s32.totalorder %s181, %s197
      %p199 = scmp.eq.s32.totalorder %s31, 0
      %p200 = por %p198, %p199
      %s201 = ssub.s32 %s33, %s40
      %p202 = scmp.eq.s32.totalorder %s201, 0
      %s204 = sadd.s32 %s203, 1
      %s205 = scalar_select %p202, %s203, %s204
      %p208 = pneg %p202
      %p209 = scmp.eq.s32.totalorder %s25, 3
      %p210 = por %p208, %p209
      %p211 = scmp.ne.s32.totalorder %s203, %s206
      %p212 = scmp.eq.s32.totalorder %s25, 0
      %p213 = por %p211, %p212
      %p214 = scmp.ne.s32.totalorder %s203, %s206
      %p215 = scmp.eq.s32.totalorder %s30, 3
      %p216 = por %p214, %p215
      %p217 = scmp.ne.s32.totalorder %s206, %s207
      %p218 = scmp.eq.s32.totalorder %s30, 0
      %p219 = por %p217, %p218
      %p220 = scmp.ne.s32.totalorder %s206, %s207
      %p221 = scmp.eq.s32.totalorder %s31, 3
      %p222 = por %p220, %p221
      %p224 = scmp.ne.s32.totalorder %s207, %s223
      %p225 = scmp.eq.s32.totalorder %s31, 0
      %p226 = por %p224, %p225
      %s227 = ssub.s32 %s33, %s40
      %p228 = scmp.eq.s32.totalorder %s227, 0
      %s230 = sadd.s32 %s229, 1
      %s231 = scalar_select %p228, %s229, %s230
      %p234 = pneg %p228
      %p235 = scmp.eq.s32.totalorder %s25, 3
      %p236 = por %p234, %p235
      %p237 = scmp.ne.s32.totalorder %s229, %s232
      %p238 = scmp.eq.s32.totalorder %s25, 0
      %p239 = por %p237, %p238
      %p240 = scmp.ne.s32.totalorder %s229, %s232
      %p241 = scmp.eq.s32.totalorder %s30, 3
      %p242 = por %p240, %p241
      %p243 = scmp.ne.s32.totalorder %s232, %s233
      %p244 = scmp.eq.s32.totalorder %s30, 0
      %p245 = por %p243, %p244
      %p246 = scmp.ne.s32.totalorder %s232, %s233
      %p247 = scmp.eq.s32.totalorder %s31, 3
      %p248 = por %p246, %p247
      %p250 = scmp.ne.s32.totalorder %s233, %s249
      %p251 = scmp.eq.s32.totalorder %s31, 0
      %p252 = por %p250, %p251
      %s253 = ssub.s32 %s33, %s40
      %p254 = scmp.eq.s32.totalorder %s253, 0
      %s256 = sadd.s32 %s255, 1
      %s257 = scalar_select %p254, %s255, %s256
      %p260 = pneg %p254
      %p261 = scmp.eq.s32.totalorder %s25, 3
      %p262 = por %p260, %p261
      %p263 = scmp.ne.s32.totalorder %s255, %s258
      %p264 = scmp.eq.s32.totalorder %s25, 0
      %p265 = por %p263, %p264
      %p266 = scmp.ne.s32.totalorder %s255, %s258
      %p267 = scmp.eq.s32.totalorder %s30, 3
      %p268 = por %p266, %p267
      %p269 = scmp.ne.s32.totalorder %s258, %s259
      %p270 = scmp.eq.s32.totalorder %s30, 0
      %p271 = por %p269, %p270
      %p272 = scmp.ne.s32.totalorder %s258, %s259
      %p273 = scmp.eq.s32.totalorder %s31, 3
      %p274 = por %p272, %p273
      %p276 = scmp.ne.s32.totalorder %s259, %s275
      %p277 = scmp.eq.s32.totalorder %s31, 0
      %p278 = por %p276, %p277
      %s279 = ssub.s32 %s33, %s40
      %p280 = scmp.eq.s32.totalorder %s279, 0
      %s282 = sadd.s32 %s281, 1
      %s283 = scalar_select %p280, %s281, %s282
      %p286 = pneg %p280
      %p287 = scmp.eq.s32.totalorder %s25, 3
      %p288 = por %p286, %p287
      %p289 = scmp.ne.s32.totalorder %s281, %s284
      %p290 = scmp.eq.s32.totalorder %s25, 0
      %p291 = por %p289, %p290
      %p292 = scmp.ne.s32.totalorder %s281, %s284
      %p293 = scmp.eq.s32.totalorder %s30, 3
      %p294 = por %p292, %p293
      %p295 = scmp.ne.s32.totalorder %s284, %s285
      %p296 = scmp.eq.s32.totalorder %s30, 0
      %p297 = por %p295, %p296
      %p298 = scmp.ne.s32.totalorder %s284, %s285
      %p299 = scmp.eq.s32.totalorder %s31, 3
      %p300 = por %p298, %p299
      %p302 = scmp.ne.s32.totalorder %s285, %s301
      %p303 = scmp.eq.s32.totalorder %s31, 0
      %p304 = por %p302, %p303
      %s305 = ssub.s32 %s33, %s40
      %p306 = scmp.eq.s32.totalorder %s305, 0
      %s308 = sadd.s32 %s307, 1
      %s309 = scalar_select %p306, %s307, %s308
      %p312 = pneg %p306
      %p313 = scmp.eq.s32.totalorder %s25, 3
      %p314 = por %p312, %p313
      %p315 = scmp.ne.s32.totalorder %s307, %s310
      %p316 = scmp.eq.s32.totalorder %s25, 0
      %p317 = por %p315, %p316
      %p318 = scmp.ne.s32.totalorder %s307, %s310
      %p319 = scmp.eq.s32.totalorder %s30, 3
      %p320 = por %p318, %p319
      %p321 = scmp.ne.s32.totalorder %s310, %s311
      %p322 = scmp.eq.s32.totalorder %s30, 0
      %p323 = por %p321, %p322
      %p324 = scmp.ne.s32.totalorder %s310, %s311
      %p325 = scmp.eq.s32.totalorder %s31, 3
      %p326 = por %p324, %p325
      %p328 = scmp.ne.s32.totalorder %s311, %s327
      %p329 = scmp.eq.s32.totalorder %s31, 0
      %p330 = por %p328, %p329
      %s331 = ssub.s32 %s33, %s40
      %p332 = scmp.eq.s32.totalorder %s331, 0
      %s334 = sadd.s32 %s333, 1
      %s335 = scalar_select %p332, %s333, %s334
      %p338 = pneg %p332
      %p339 = scmp.eq.s32.totalorder %s25, 3
      %p340 = por %p338, %p339
      %p341 = scmp.ne.s32.totalorder %s333, %s336
      %p342 = scmp.eq.s32.totalorder %s25, 0
      %p343 = por %p341, %p342
      %p344 = scmp.ne.s32.totalorder %s333, %s336
      %p345 = scmp.eq.s32.totalorder %s30, 3
      %p346 = por %p344, %p345
      %p347 = scmp.ne.s32.totalorder %s336, %s337
      %p348 = scmp.eq.s32.totalorder %s30, 0
      %p349 = por %p347, %p348
      %p350 = scmp.ne.s32.totalorder %s336, %s337
      %p351 = scmp.eq.s32.totalorder %s31, 3
      %p352 = por %p350, %p351
      %p354 = scmp.ne.s32.totalorder %s337, %s353
      %p355 = scmp.eq.s32.totalorder %s31, 0
      %p356 = por %p354, %p355
      %s357 = ssub.s32 %s33, %s40
      %p358 = scmp.eq.s32.totalorder %s357, 0
      %s360 = sadd.s32 %s359, 1
      %s361 = scalar_select %p358, %s359, %s360
      %p364 = pneg %p358
      %p365 = scmp.eq.s32.totalorder %s25, 3
      %p366 = por %p364, %p365
      %p367 = scmp.ne.s32.totalorder %s359, %s362
      %p368 = scmp.eq.s32.totalorder %s25, 0
      %p369 = por %p367, %p368
      %p370 = scmp.ne.s32.totalorder %s359, %s362
      %p371 = scmp.eq.s32.totalorder %s30, 3
      %p372 = por %p370, %p371
      %p373 = scmp.ne.s32.totalorder %s362, %s363
      %p374 = scmp.eq.s32.totalorder %s30, 0
      %p375 = por %p373, %p374
      %p376 = scmp.ne.s32.totalorder %s362, %s363
      %p377 = scmp.eq.s32.totalorder %s31, 3
      %p378 = por %p376, %p377
      %p380 = scmp.ne.s32.totalorder %s363, %s379
      %p381 = scmp.eq.s32.totalorder %s31, 0
      %p382 = por %p380, %p381
      %s383 = ssub.s32 %s32, %s44
      %p384 = scmp.eq.s32.totalorder %s383, 0
      %s386 = sadd.s32 %s385, 1
      %s387 = scalar_select %p384, %s385, %s386
      %p390 = pneg %p384
      %p391 = scmp.eq.s32.totalorder %s25, 3
      %p392 = por %p390, %p391
      %p393 = scmp.ne.s32.totalorder %s385, %s388
      %p394 = scmp.eq.s32.totalorder %s25, 0
      %p395 = por %p393, %p394
      %p396 = scmp.ne.s32.totalorder %s385, %s388
      %p397 = scmp.eq.s32.totalorder %s30, 3
      %p398 = por %p396, %p397
      %p399 = scmp.ne.s32.totalorder %s388, %s389
      %p400 = scmp.eq.s32.totalorder %s30, 0
      %p401 = por %p399, %p400
      %p402 = scmp.ne.s32.totalorder %s388, %s389
      %p403 = scmp.eq.s32.totalorder %s31, 3
      %p404 = por %p402, %p403
      %p406 = scmp.ne.s32.totalorder %s389, %s405
      %p407 = scmp.eq.s32.totalorder %s31, 0
      %p408 = por %p406, %p407
      %p409 = scmp.le.s32.totalorder 1, %s25
      %p410 = scmp.lt.s32.totalorder %s25, 5
      %p411 = pnand %p409, %p410
      %p412 = pneg %p411
      // Predicated region
      $region9: #{tpu_custom_call.1} parent=5 // pred_check
        _
      $region10: #{tpu_custom_call.1} parent=5 // pred_check_branch
        %414 = sbr.rel (%p411) target = $region12
      $region11: #{tpu_custom_call.1} parent=5 // pred_region
        %s415 = ssub.s32 %s25, 1
      $region12: #{tpu_custom_call.1} parent=5 // pred_fallthru
        _
      %p416 = scmp.lt.s32.totalorder %s25, 4
      // Predicated region
      $region13: #{tpu_custom_call.1} parent=5 // pred_check
        %p417 = pneg %p416
      $region14: #{tpu_custom_call.1} parent=5 // pred_check_branch
        %419 = sbr.rel (%p417) target = $region16
      $region15: #{tpu_custom_call.1} parent=5 // pred_region
        // Predicated region
        $region17: #{tpu_custom_call.1} parent=15 // pred_check
          %p420 = pneg %p57
        $region18: #{tpu_custom_call.1} parent=15 // pred_check_branch
          %422 = sbr.rel (%p420) target = $region20
        $region19: #{tpu_custom_call.1} parent=15 // pred_region
          %s423 = sand.u32 %s47, 1
          %s424 = scalar_lea.sflag [#allocation3], %s423
          %s425 = sand.u32 %s47, 1
          %s426 = smul.addr %s425, 8
          %s427 = scalar_lea.vmem [#allocation2], %s426
          %s429 = ssub.s32 128, 128
          %430 = vsyncadd %s424, %s429
          %s431 = smul.addr %s32, 128
          %s432 = scalar_lea.hbm %s0, %s431
          %s434 = sshll.u32 %s427, 4
          %s435 = int_to_ptr.vmem [resolvable:$true] %s434
          %437 = dma.hbm_to_vmem [thread:$0]  %s432, 128, %s435, %s424
        $region20: #{tpu_custom_call.1} parent=15 // pred_fallthru
          _
        // Predicated region
        $region21: #{tpu_custom_call.1} parent=15 // pred_check
          %p438 = pneg %p83
        $region22: #{tpu_custom_call.1} parent=15 // pred_check_branch
          %440 = sbr.rel (%p438) target = $region24
        $region23: #{tpu_custom_call.1} parent=15 // pred_region
          %p441 = scmp.lt.s32.totalorder %s33, 1
          %s442 = scalar_select %p441, %s33, 1
          %s443 = scalar_lea.vmem %s1, %s442
        $region24: #{tpu_custom_call.1} parent=15 // pred_fallthru
          _
        // Predicated region
        $region25: #{tpu_custom_call.1} parent=15 // pred_check
          %p444 = pneg %p109
        $region26: #{tpu_custom_call.1} parent=15 // pred_check_branch
          %446 = sbr.rel (%p444) target = $region28
        $region27: #{tpu_custom_call.1} parent=15 // pred_region
          %p447 = scmp.lt.s32.totalorder %s33, 1
          %s448 = scalar_select %p447, %s33, 1
          %s449 = scalar_lea.vmem %s2, %s448
        $region28: #{tpu_custom_call.1} parent=15 // pred_fallthru
          _
        // Predicated region
        $region29: #{tpu_custom_call.1} parent=15 // pred_check
          %p450 = pneg %p135
        $region30: #{tpu_custom_call.1} parent=15 // pred_check_branch
          %452 = sbr.rel (%p450) target = $region32
        $region31: #{tpu_custom_call.1} parent=15 // pred_region
          %p453 = scmp.lt.s32.totalorder %s33, 1
          %s454 = scalar_select %p453, %s33, 1
          %s455 = smul.addr %s454, 4
          %s456 = smul.addr %s455, 8
          %s457 = scalar_lea.vmem %s3, %s456
        $region32: #{tpu_custom_call.1} parent=15 // pred_fallthru
          _
        // Predicated region
        $region33: #{tpu_custom_call.1} parent=15 // pred_check
          %p458 = pneg %p161
        $region34: #{tpu_custom_call.1} parent=15 // pred_check_branch
          %460 = sbr.rel (%p458) target = $region36
        $region35: #{tpu_custom_call.1} parent=15 // pred_region
          %p461 = scmp.lt.s32.totalorder %s33, 1
          %s462 = scalar_select %p461, %s33, 1
          %s463 = scalar_lea.vmem %s4, %s462
        $region36: #{tpu_custom_call.1} parent=15 // pred_fallthru
          _
        // Predicated region
        $region37: #{tpu_custom_call.1} parent=15 // pred_check
          %p464 = pneg %p187
        $region38: #{tpu_custom_call.1} parent=15 // pred_check_branch
          %466 = sbr.rel (%p464) target = $region40
        $region39: #{tpu_custom_call.1} parent=15 // pred_region
          %p467 = scmp.lt.s32.totalorder %s33, 1
          %s468 = scalar_select %p467, %s33, 1
          %s469 = smul.addr %s468, 4
          %s470 = smul.addr %s469, 8
          %s471 = scalar_lea.vmem %s5, %s470
        $region40: #{tpu_custom_call.1} parent=15 // pred_fallthru
          _
        // Predicated region
        $region41: #{tpu_custom_call.1} parent=15 // pred_check
          %p472 = pneg %p213
        $region42: #{tpu_custom_call.1} parent=15 // pred_check_branch
          %474 = sbr.rel (%p472) target = $region44
        $region43: #{tpu_custom_call.1} parent=15 // pred_region
          %p475 = scmp.lt.s32.totalorder %s33, 1
          %s476 = scalar_select %p475, %s33, 1
          %s477 = scalar_lea.vmem %s6, %s476
        $region44: #{tpu_custom_call.1} parent=15 // pred_fallthru
          _
        // Predicated region
        $region45: #{tpu_custom_call.1} parent=15 // pred_check
          %p478 = pneg %p239
        $region46: #{tpu_custom_call.1} parent=15 // pred_check_branch
          %480 = sbr.rel (%p478) target = $region48
        $region47: #{tpu_custom_call.1} parent=15 // pred_region
          %p481 = scmp.lt.s32.totalorder %s33, 1
          %s482 = scalar_select %p481, %s33, 1
          %s483 = scalar_lea.vmem %s7, %s482
        $region48: #{tpu_custom_call.1} parent=15 // pred_fallthru
          _
        // Predicated region
        $region49: #{tpu_custom_call.1} parent=15 // pred_check
          %p484 = pneg %p265
        $region50: #{tpu_custom_call.1} parent=15 // pred_check_branch
          %486 = sbr.rel (%p484) target = $region52
        $region51: #{tpu_custom_call.1} parent=15 // pred_region
          %p487 = scmp.lt.s32.totalorder %s33, 1
          %s488 = scalar_select %p487, %s33, 1
          %s489 = scalar_lea.vmem %s8, %s488
        $region52: #{tpu_custom_call.1} parent=15 // pred_fallthru
          _
        // Predicated region
        $region53: #{tpu_custom_call.1} parent=15 // pred_check
          %p490 = pneg %p291
        $region54: #{tpu_custom_call.1} parent=15 // pred_check_branch
          %492 = sbr.rel (%p490) target = $region56
        $region55: #{tpu_custom_call.1} parent=15 // pred_region
          %p493 = scmp.lt.s32.totalorder %s33, 1
          %s494 = scalar_select %p493, %s33, 1
          %s495 = smul.addr %s494, 4
          %s496 = smul.addr %s495, 8
          %s497 = scalar_lea.vmem %s9, %s496
        $region56: #{tpu_custom_call.1} parent=15 // pred_fallthru
          _
        // Predicated region
        $region57: #{tpu_custom_call.1} parent=15 // pred_check
          %p498 = pneg %p317
        $region58: #{tpu_custom_call.1} parent=15 // pred_check_branch
          %500 = sbr.rel (%p498) target = $region60
        $region59: #{tpu_custom_call.1} parent=15 // pred_region
          %p501 = scmp.lt.s32.totalorder %s33, 1
          %s502 = scalar_select %p501, %s33, 1
          %s503 = scalar_lea.vmem %s10, %s502
        $region60: #{tpu_custom_call.1} parent=15 // pred_fallthru
          _
        // Predicated region
        $region61: #{tpu_custom_call.1} parent=15 // pred_check
          %p504 = pneg %p343
        $region62: #{tpu_custom_call.1} parent=15 // pred_check_branch
          %506 = sbr.rel (%p504) target = $region64
        $region63: #{tpu_custom_call.1} parent=15 // pred_region
          %p507 = scmp.lt.s32.totalorder %s33, 1
          %s508 = scalar_select %p507, %s33, 1
          %s509 = smul.addr %s508, 16
          %s510 = smul.addr %s509, 8
          %s511 = scalar_lea.vmem %s11, %s510
        $region64: #{tpu_custom_call.1} parent=15 // pred_fallthru
          _
        // Predicated region
        $region65: #{tpu_custom_call.1} parent=15 // pred_check
          %p512 = pneg %p369
        $region66: #{tpu_custom_call.1} parent=15 // pred_check_branch
          %514 = sbr.rel (%p512) target = $region68
        $region67: #{tpu_custom_call.1} parent=15 // pred_region
          %p515 = scmp.lt.s32.totalorder %s33, 1
          %s516 = scalar_select %p515, %s33, 1
          %s517 = scalar_lea.vmem %s12, %s516
        $region68: #{tpu_custom_call.1} parent=15 // pred_fallthru
          _
      $region16: #{tpu_custom_call.1} parent=5 // pred_fallthru
        _
      %p518 = scmp.le.s32.totalorder 1, %s25
      %p519 = scmp.lt.s32.totalorder %s25, 5
      %p520 = pnand %p518, %p519
      %p521 = pneg %p520
      // Predicated region
      $region69: #{tpu_custom_call.1} parent=5 // pred_check
        _
      $region70: #{tpu_custom_call.1} parent=5 // pred_check_branch
        %523 = sbr.rel (%p520) target = $region72
      $region71: #{tpu_custom_call.1} parent=5 // pred_region
        %s524 = ssub.s32 %s25, 1
        %s525 = sand.u32 %s50, 1
        %s526 = scalar_lea.sflag [#allocation3], %s525
        %s527 = sand.u32 %s50, 1
        %s528 = smul.addr %s527, 8
        %s529 = scalar_lea.vmem [#allocation2], %s528
        // Predicated region
        $region73: #{tpu_custom_call.1} parent=71 // pred_check
          %p530 = pneg %p63
        $region74: #{tpu_custom_call.1} parent=71 // pred_check_branch
          %532 = sbr.rel (%p530) target = $region76
        $region75: #{tpu_custom_call.1} parent=71 // pred_region
          %533 = dma.done %s526, 128
        $region76: #{tpu_custom_call.1} parent=71 // pred_fallthru
          _
        %s534 = sand.u32 %s50, 1
        %s535 = scalar_lea.sflag [#allocation3], %s534
        %s536 = sand.u32 %s50, 1
        %s537 = smul.addr %s536, 8
        %s538 = scalar_lea.vmem [#allocation2], %s537
        %p539 = pneg %p63
        %p540 = pneg %p60
        %p541 = scmp.lt.s32.totalorder %s35, 1
        %s542 = scalar_select %p541, %s35, 1
        %s543 = scalar_lea.vmem %s1, %s542
        %p544 = pneg %p89
        %p545 = pneg %p86
        %p546 = scmp.lt.s32.totalorder %s35, 1
        %s547 = scalar_select %p546, %s35, 1
        %s548 = scalar_lea.vmem %s2, %s547
        %p549 = pneg %p115
        %p550 = pneg %p112
        %p551 = scmp.lt.s32.totalorder %s35, 1
        %s552 = scalar_select %p551, %s35, 1
        %s553 = smul.addr %s552, 4
        %s554 = smul.addr %s553, 8
        %s555 = scalar_lea.vmem %s3, %s554
        %p556 = pneg %p141
        %p557 = pneg %p138
        %p558 = scmp.lt.s32.totalorder %s35, 1
        %s559 = scalar_select %p558, %s35, 1
        %s560 = scalar_lea.vmem %s4, %s559
        %p561 = pneg %p167
        %p562 = pneg %p164
        %p563 = scmp.lt.s32.totalorder %s35, 1
        %s564 = scalar_select %p563, %s35, 1
        %s565 = smul.addr %s564, 4
        %s566 = smul.addr %s565, 8
        %s567 = scalar_lea.vmem %s5, %s566
        %p568 = pneg %p193
        %p569 = pneg %p190
        %p570 = scmp.lt.s32.totalorder %s35, 1
        %s571 = scalar_select %p570, %s35, 1
        %s572 = scalar_lea.vmem %s6, %s571
        %p573 = pneg %p219
        %p574 = pneg %p216
        %p575 = scmp.lt.s32.totalorder %s35, 1
        %s576 = scalar_select %p575, %s35, 1
        %s577 = scalar_lea.vmem %s7, %s576
        %p578 = pneg %p245
        %p579 = pneg %p242
        %p580 = scmp.lt.s32.totalorder %s35, 1
        %s581 = scalar_select %p580, %s35, 1
        %s582 = scalar_lea.vmem %s8, %s581
        %p583 = pneg %p271
        %p584 = pneg %p268
        %p585 = scmp.lt.s32.totalorder %s35, 1
        %s586 = scalar_select %p585, %s35, 1
        %s587 = smul.addr %s586, 4
        %s588 = smul.addr %s587, 8
        %s589 = scalar_lea.vmem %s9, %s588
        %p590 = pneg %p297
        %p591 = pneg %p294
        %p592 = scmp.lt.s32.totalorder %s35, 1
        %s593 = scalar_select %p592, %s35, 1
        %s594 = scalar_lea.vmem %s10, %s593
        %p595 = pneg %p323
        %p596 = pneg %p320
        %p597 = scmp.lt.s32.totalorder %s35, 1
        %s598 = scalar_select %p597, %s35, 1
        %s599 = smul.addr %s598, 16
        %s600 = smul.addr %s599, 8
        %s601 = scalar_lea.vmem %s11, %s600
        %p602 = pneg %p349
        %p603 = pneg %p346
        %p604 = scmp.lt.s32.totalorder %s35, 1
        %s605 = scalar_select %p604, %s35, 1
        %s606 = scalar_lea.vmem %s12, %s605
        %p607 = pneg %p375
        %p608 = pneg %p372
        %p609 = pneg %p401
        %p610 = pneg %p398
        %s611 = sand.u32 %s388, 1
        %s612 = scalar_lea.sflag [#allocation4], %s611
        %s613 = sand.u32 %s388, 1
        %s614 = smul.addr %s613, 8
        %s615 = scalar_lea.vmem [#allocation5], %s614
        %p616 = scmp.lt.s32.totalorder %s35, 1
        %s617 = scalar_select %p616, %s35, 1
        %s618 = scalar_lea.vmem %s1, %s617
        %p619 = scmp.lt.s32.totalorder %s35, 1
        %s620 = scalar_select %p619, %s35, 1
        %s621 = scalar_lea.vmem %s2, %s620
        %p622 = scmp.lt.s32.totalorder %s35, 1
        %s623 = scalar_select %p622, %s35, 1
        %s624 = smul.addr %s623, 4
        %s625 = smul.addr %s624, 8
        %s626 = scalar_lea.vmem %s3, %s625
        %p627 = scmp.lt.s32.totalorder %s35, 1
        %s628 = scalar_select %p627, %s35, 1
        %s629 = scalar_lea.vmem %s4, %s628
        %p630 = scmp.lt.s32.totalorder %s35, 1
        %s631 = scalar_select %p630, %s35, 1
        %s632 = smul.addr %s631, 4
        %s633 = smul.addr %s632, 8
        %s634 = scalar_lea.vmem %s5, %s633
        %p635 = scmp.lt.s32.totalorder %s35, 1
        %s636 = scalar_select %p635, %s35, 1
        %s637 = scalar_lea.vmem %s6, %s636
        %p638 = scmp.lt.s32.totalorder %s35, 1
        %s639 = scalar_select %p638, %s35, 1
        %s640 = scalar_lea.vmem %s7, %s639
        %p641 = scmp.lt.s32.totalorder %s35, 1
        %s642 = scalar_select %p641, %s35, 1
        %s643 = scalar_lea.vmem %s8, %s642
        %p644 = scmp.lt.s32.totalorder %s35, 1
        %s645 = scalar_select %p644, %s35, 1
        %s646 = smul.addr %s645, 4
        %s647 = smul.addr %s646, 8
        %s648 = scalar_lea.vmem %s9, %s647
        %p649 = scmp.lt.s32.totalorder %s35, 1
        %s650 = scalar_select %p649, %s35, 1
        %s651 = scalar_lea.vmem %s10, %s650
        %p652 = scmp.lt.s32.totalorder %s35, 1
        %s653 = scalar_select %p652, %s35, 1
        %s654 = smul.addr %s653, 16
        %s655 = smul.addr %s654, 8
        %s656 = scalar_lea.vmem %s11, %s655
        %p657 = scmp.lt.s32.totalorder %s35, 1
        %s658 = scalar_select %p657, %s35, 1
        %s659 = scalar_lea.vmem %s12, %s658
        %p660 = scmp.eq.s32.totalorder %s35, 0
        // Predicated region
        $region77: #{tpu_custom_call.1} parent=71 // pred_check
          %p661 = pneg %p660
        $region78: #{tpu_custom_call.1} parent=71 // pred_check_branch
          %663 = sbr.rel (%p661) target = $region80
        $region79: #{tpu_custom_call.1} parent=71 // pred_region
          %v664 = vld [vmem:[%s529] sm:$0xff]
          %vm665 = vcmask 261120
          %666 = vst.msk [vmem:[%s615] sm:$0xff] %vm665, %v664
        $region80: #{tpu_custom_call.1} parent=71 // pred_fallthru
          _
        %v667 = vld [vmem:[%s615] sm:$0xff]
        %v668 = vld [vmem:[%s618] sm:$0x1]
        %v669 = vld [vmem:[%s621] sm:$0x1]
        %vm670 = vcmask 261120
        %v671 = vsel %vm670, %v667, 0.0
        %672 = vadd.xlane.f32.xlu0 %v671
        %v673 = vpop.xlane.xlu0 %672
        %v674 = vrcp.pop 32.0
        %v675 = vmul.f32 %v673, %v674
        %v676 = vsub.f32 %v667, %v675
        %v677 = vmul.f32 %v676, %v676
        %v678 = vsel %vm670, %v677, 0.0
        %679 = vadd.xlane.f32.xlu0 %v678
        %v680 = vpop.xlane.xlu0 %679
        %v681 = vmul.f32 %v680, %v674
        %v682 = vadd.f32 %v681, 1e-05
        %v683 = vrsqrt.pop %v682
        %v684 = vmul.f32 %v676, %v683
        %v686 = vlaneseq
        %v687 = vshrl.u32 %v686, 7
        %v688 = vsub.s32 0, %v687
        %v689 = vrot.slane %v668, %v688
        %v691 = vmul.f32 %v684, %v689
        %v693 = vlaneseq
        %v694 = vshrl.u32 %v693, 7
        %v695 = vsub.s32 0, %v694
        %v696 = vrot.slane %v669, %v695
        %v698 = vadd.f32 %v691, %v696
        %v699 = vld [vmem:[%s626] sm:$0xff]
        %v700 = vld [vmem:[%s626 + $0x8] sm:$0xff]
        %v701 = vld [vmem:[%s626 + $0x10] sm:$0xff]
        %v702 = vld [vmem:[%s626 + $0x18] sm:$0xff]
        %v703 = vld [vmem:[%s629] sm:$0x1]
        %v705 = vlaneseq
        %v706 = vshrl.u32 %v705, 7
        %v707 = vsub.s32 0, %v706
        %v708 = vrot.slane %v703, %v707
        %v711 = vsel %vm670, %v698, 0
        %713 = vmatprep.subr.mxu0 0.0
        %714 = vmatpush1.msra.mxu0 %v699
        %715 = vmatprep.subr.mxu0 0.0
        %716 = vmatpush1.msra.mxu0 %v700
        %717 = vmatprep.subr.mxu0 0.0
        %718 = vmatpush1.msra.mxu0 %v701
        %719 = vmatprep.subr.mxu0 0.0
        %720 = vmatpush1.msra.mxu0 %v702
        %721 = vmatprep.subr.mxu0 0.0
        %722 = vmatpush1.msra.mxu0 0.0
        %723 = vmatprep.subr.mxu0 0.0
        %724 = vmatpush1.msra.mxu0 0.0
        %725 = vmatprep.subr.mxu0 0.0
        %726 = vmatpush1.msra.mxu0 0.0
        %727 = vmatprep.subr.mxu0 0.0
        %728 = vmatpush1.msra.mxu0 0.0
        %729 = vmatprep.subr.mxu0 0.0
        %730 = vmatpush1.msra.mxu0 0.0
        %731 = vmatprep.subr.mxu0 0.0
        %732 = vmatpush1.msra.mxu0 0.0
        %733 = vmatprep.subr.mxu0 0.0
        %734 = vmatpush1.msra.mxu0 0.0
        %735 = vmatprep.subr.mxu0 0.0
        %736 = vmatpush1.msra.mxu0 0.0
        %737 = vmatprep.subr.mxu0 0.0
        %738 = vmatpush1.msra.mxu0 0.0
        %739 = vmatprep.subr.mxu0 0.0
        %740 = vmatpush1.msra.mxu0 0.0
        %741 = vmatprep.subr.mxu0 0.0
        %742 = vmatpush1.msra.mxu0 0.0
        %743 = vmatprep.subr.mxu0 0.0
        %744 = vmatpush1.msra.mxu0 0.0
        %745 = vmatprep.subr.mxu0 0.0
        %746 = vmatpush1.msra.mxu0 0.0
        %747 = vmatprep.subr.mxu0 0.0
        %748 = vmatpush1.msra.mxu0 0.0
        %749 = vmatprep.subr.mxu0 0.0
        %750 = vmatpush1.msra.mxu0 0.0
        %751 = vmatprep.subr.mxu0 0.0
        %752 = vmatpush1.msra.mxu0 0.0
        %753 = vmatprep.subr.mxu0 0.0
        %754 = vmatpush1.msra.mxu0 0.0
        %755 = vmatprep.subr.mxu0 0.0
        %756 = vmatpush1.msra.mxu0 0.0
        %757 = vmatprep.subr.mxu0 0.0
        %758 = vmatpush1.msra.mxu0 0.0
        %759 = vmatprep.subr.mxu0 0.0
        %760 = vmatpush1.msra.mxu0 0.0
        %761 = vmatprep.subr.mxu0 0.0
        %762 = vmatpush1.msra.mxu0 0.0
        %763 = vmatprep.subr.mxu0 0.0
        %764 = vmatpush1.msra.mxu0 0.0
        %765 = vmatprep.subr.mxu0 0.0
        %766 = vmatpush1.msra.mxu0 0.0
        %767 = vmatprep.subr.mxu0 0.0
        %768 = vmatpush1.msra.mxu0 0.0
        %769 = vmatprep.subr.mxu0 0.0
        %770 = vmatpush1.msra.mxu0 0.0
        %771 = vmatprep.subr.mxu0 0.0
        %772 = vmatpush1.msra.mxu0 0.0
        %773 = vmatprep.subr.mxu0 0.0
        %774 = vmatpush1.msra.mxu0 0.0
        %775 = vmatprep.subr.mxu0 0.0
        %776 = vmatpush1.msra.mxu0 0.0
        %777 = vmatprep.mubr.f32.mxu0 0.0
        %778 = vmatmul.mubr.f32.gmra.mrb[0].mxu0 %v711
        %v779 = vpop.f32.mrb[0].mxu0
        %v780 = vadd.f32 %v708, %v779
        %v781 = vpop.f32.mrb[0].mxu0
        %782 = vdwg.mxu0
        %v783 = vmul.f32 %v780, 0.35355338
        %v784 = vld [vmem:[%s634] sm:$0xff]
        %v785 = vld [vmem:[%s634 + $0x8] sm:$0xff]
        %v786 = vld [vmem:[%s634 + $0x10] sm:$0xff]
        %v787 = vld [vmem:[%s634 + $0x18] sm:$0xff]
        %789 = vrot.lane.b32.xlu0 %v780, 96
        %v790 = vpop.permute.xlu0 %789
        %vm791 = vcmask 64512
        %v793 = vsel %vm791, %v783, 0
        %v795 = vsel %vm791, %v790, 0
        %797 = vmatprep.subr.mxu0 0.0
        %798 = vmatpush1.xpose.msra.mxu0 %v795
        %799 = vmatprep.subr.mxu0 0.0
        %800 = vmatpush1.xpose.msra.mxu0 0.0
        %801 = vmatprep.subr.mxu0 0.0
        %802 = vmatpush1.xpose.msra.mxu0 0.0
        %803 = vmatprep.subr.mxu0 0.0
        %804 = vmatpush1.xpose.msra.mxu0 0.0
        %805 = vmatprep.subr.mxu0 0.0
        %806 = vmatpush1.xpose.msra.mxu0 0.0
        %807 = vmatprep.subr.mxu0 0.0
        %808 = vmatpush1.xpose.msra.mxu0 0.0
        %809 = vmatprep.subr.mxu0 0.0
        %810 = vmatpush1.xpose.msra.mxu0 0.0
        %811 = vmatprep.subr.mxu0 0.0
        %812 = vmatpush1.xpose.msra.mxu0 0.0
        %813 = vmatprep.subr.mxu0 0.0
        %814 = vmatpush1.xpose.msra.mxu0 0.0
        %815 = vmatprep.subr.mxu0 0.0
        %816 = vmatpush1.xpose.msra.mxu0 0.0
        %817 = vmatprep.subr.mxu0 0.0
        %818 = vmatpush1.xpose.msra.mxu0 0.0
        %819 = vmatprep.subr.mxu0 0.0
        %820 = vmatpush1.xpose.msra.mxu0 0.0
        %821 = vmatprep.subr.mxu0 0.0
        %822 = vmatpush1.xpose.msra.mxu0 0.0
        %823 = vmatprep.subr.mxu0 0.0
        %824 = vmatpush1.xpose.msra.mxu0 0.0
        %825 = vmatprep.subr.mxu0 0.0
        %826 = vmatpush1.xpose.msra.mxu0 0.0
        %827 = vmatprep.subr.mxu0 0.0
        %828 = vmatpush1.xpose.msra.mxu0 0.0
        %829 = vmatprep.subr.mxu0 0.0
        %830 = vmatpush1.xpose.msra.mxu0 0.0
        %831 = vmatprep.subr.mxu0 0.0
        %832 = vmatpush1.xpose.msra.mxu0 0.0
        %833 = vmatprep.subr.mxu0 0.0
        %834 = vmatpush1.xpose.msra.mxu0 0.0
        %835 = vmatprep.subr.mxu0 0.0
        %836 = vmatpush1.xpose.msra.mxu0 0.0
        %837 = vmatprep.subr.mxu0 0.0
        %838 = vmatpush1.xpose.msra.mxu0 0.0
        %839 = vmatprep.subr.mxu0 0.0
        %840 = vmatpush1.xpose.msra.mxu0 0.0
        %841 = vmatprep.subr.mxu0 0.0
        %842 = vmatpush1.xpose.msra.mxu0 0.0
        %843 = vmatprep.subr.mxu0 0.0
        %844 = vmatpush1.xpose.msra.mxu0 0.0
        %845 = vmatprep.subr.mxu0 0.0
        %846 = vmatpush1.xpose.msra.mxu0 0.0
        %847 = vmatprep.subr.mxu0 0.0
        %848 = vmatpush1.xpose.msra.mxu0 0.0
        %849 = vmatprep.subr.mxu0 0.0
        %850 = vmatpush1.xpose.msra.mxu0 0.0
        %851 = vmatprep.subr.mxu0 0.0
        %852 = vmatpush1.xpose.msra.mxu0 0.0
        %853 = vmatprep.subr.mxu0 0.0
        %854 = vmatpush1.xpose.msra.mxu0 0.0
        %855 = vmatprep.subr.mxu0 0.0
        %856 = vmatpush1.xpose.msra.mxu0 0.0
        %857 = vmatprep.subr.mxu0 0.0
        %858 = vmatpush1.xpose.msra.mxu0 0.0
        %859 = vmatprep.subr.mxu0 0.0
        %860 = vmatpush1.xpose.msra.mxu0 0.0
        %861 = vmatprep.mubr.f32.mxu0 0.0
        %862 = vmatmul.mubr.f32.gmra.mrb[0].mxu0 %v793
        %v863 = vpop.f32.mrb[0].mxu0
        %v864 = vadd.f32 0.0, %v863
        %v865 = vpop.f32.mrb[0].mxu0
        %866 = vdwg.mxu0
        %v867 = vsel %vm791, %v864, -inf
        %868 = vmax.xlane.f32.xlu0 %v867
        %v869 = vpop.xlane.xlu0 %868
        %v870 = vsub.f32 %v864, %v869
        %v871 = vmul.f32 %v870, 1.442695
        %v872 = vpow.pop %v871
        %v873 = vsel %vm791, %v872, 0.0
        %874 = vadd.xlane.f32.xlu0 %v873
        %v875 = vpop.xlane.xlu0 %874
        %v876 = vrcp.pop %v875
        %v877 = vmul.f32 %v872, %v876
        %878 = vrot.lane.b32.xlu0 %v780, 64
        %v879 = vpop.permute.xlu0 %878
        %v882 = vsel %vm791, %v877, 0
        %884 = vmatprep.subr.mxu0 0.0
        %885 = vmatpush1.msra.mxu0 %v879
        %886 = vmatprep.subr.mxu0 0.0
        %887 = vmatpush1.msra.mxu0 0.0
        %888 = vmatprep.subr.mxu0 0.0
        %889 = vmatpush1.msra.mxu0 0.0
        %890 = vmatprep.subr.mxu0 0.0
        %891 = vmatpush1.msra.mxu0 0.0
        %892 = vmatprep.subr.mxu0 0.0
        %893 = vmatpush1.msra.mxu0 0.0
        %894 = vmatprep.subr.mxu0 0.0
        %895 = vmatpush1.msra.mxu0 0.0
        %896 = vmatprep.subr.mxu0 0.0
        %897 = vmatpush1.msra.mxu0 0.0
        %898 = vmatprep.subr.mxu0 0.0
        %899 = vmatpush1.msra.mxu0 0.0
        %900 = vmatprep.subr.mxu0 0.0
        %901 = vmatpush1.msra.mxu0 0.0
        %902 = vmatprep.subr.mxu0 0.0
        %903 = vmatpush1.msra.mxu0 0.0
        %904 = vmatprep.subr.mxu0 0.0
        %905 = vmatpush1.msra.mxu0 0.0
        %906 = vmatprep.subr.mxu0 0.0
        %907 = vmatpush1.msra.mxu0 0.0
        %908 = vmatprep.subr.mxu0 0.0
        %909 = vmatpush1.msra.mxu0 0.0
        %910 = vmatprep.subr.mxu0 0.0
        %911 = vmatpush1.msra.mxu0 0.0
        %912 = vmatprep.subr.mxu0 0.0
        %913 = vmatpush1.msra.mxu0 0.0
        %914 = vmatprep.subr.mxu0 0.0
        %915 = vmatpush1.msra.mxu0 0.0
        %916 = vmatprep.subr.mxu0 0.0
        %917 = vmatpush1.msra.mxu0 0.0
        %918 = vmatprep.subr.mxu0 0.0
        %919 = vmatpush1.msra.mxu0 0.0
        %920 = vmatprep.subr.mxu0 0.0
        %921 = vmatpush1.msra.mxu0 0.0
        %922 = vmatprep.subr.mxu0 0.0
        %923 = vmatpush1.msra.mxu0 0.0
        %924 = vmatprep.subr.mxu0 0.0
        %925 = vmatpush1.msra.mxu0 0.0
        %926 = vmatprep.subr.mxu0 0.0
        %927 = vmatpush1.msra.mxu0 0.0
        %928 = vmatprep.subr.mxu0 0.0
        %929 = vmatpush1.msra.mxu0 0.0
        %930 = vmatprep.subr.mxu0 0.0
        %931 = vmatpush1.msra.mxu0 0.0
        %932 = vmatprep.subr.mxu0 0.0
        %933 = vmatpush1.msra.mxu0 0.0
        %934 = vmatprep.subr.mxu0 0.0
        %935 = vmatpush1.msra.mxu0 0.0
        %936 = vmatprep.subr.mxu0 0.0
        %937 = vmatpush1.msra.mxu0 0.0
        %938 = vmatprep.subr.mxu0 0.0
        %939 = vmatpush1.msra.mxu0 0.0
        %940 = vmatprep.subr.mxu0 0.0
        %941 = vmatpush1.msra.mxu0 0.0
        %942 = vmatprep.subr.mxu0 0.0
        %943 = vmatpush1.msra.mxu0 0.0
        %944 = vmatprep.subr.mxu0 0.0
        %945 = vmatpush1.msra.mxu0 0.0
        %946 = vmatprep.subr.mxu0 0.0
        %947 = vmatpush1.msra.mxu0 0.0
        %948 = vmatprep.mubr.f32.mxu0 0.0
        %949 = vmatmul.mubr.f32.gmra.mrb[0].mxu0 %v882
        %v950 = vpop.f32.mrb[0].mxu0
        %v951 = vadd.f32 0.0, %v950
        %v952 = vpop.f32.mrb[0].mxu0
        %953 = vdwg.mxu0
        %954 = vrot.lane.b32.xlu0 %v783, 120
        %v955 = vpop.permute.xlu0 %954
        %956 = vrot.lane.b32.xlu0 %v780, 88
        %v957 = vpop.permute.xlu0 %956
        %v958 = vsel %vm791, %v955, 0
        %v960 = vsel %vm791, %v957, 0
        %962 = vmatprep.subr.mxu0 0.0
        %963 = vmatpush1.xpose.msra.mxu0 %v960
        %964 = vmatprep.subr.mxu0 0.0
        %965 = vmatpush1.xpose.msra.mxu0 0.0
        %966 = vmatprep.subr.mxu0 0.0
        %967 = vmatpush1.xpose.msra.mxu0 0.0
        %968 = vmatprep.subr.mxu0 0.0
        %969 = vmatpush1.xpose.msra.mxu0 0.0
        %970 = vmatprep.subr.mxu0 0.0
        %971 = vmatpush1.xpose.msra.mxu0 0.0
        %972 = vmatprep.subr.mxu0 0.0
        %973 = vmatpush1.xpose.msra.mxu0 0.0
        %974 = vmatprep.subr.mxu0 0.0
        %975 = vmatpush1.xpose.msra.mxu0 0.0
        %976 = vmatprep.subr.mxu0 0.0
        %977 = vmatpush1.xpose.msra.mxu0 0.0
        %978 = vmatprep.subr.mxu0 0.0
        %979 = vmatpush1.xpose.msra.mxu0 0.0
        %980 = vmatprep.subr.mxu0 0.0
        %981 = vmatpush1.xpose.msra.mxu0 0.0
        %982 = vmatprep.subr.mxu0 0.0
        %983 = vmatpush1.xpose.msra.mxu0 0.0
        %984 = vmatprep.subr.mxu0 0.0
        %985 = vmatpush1.xpose.msra.mxu0 0.0
        %986 = vmatprep.subr.mxu0 0.0
        %987 = vmatpush1.xpose.msra.mxu0 0.0
        %988 = vmatprep.subr.mxu0 0.0
        %989 = vmatpush1.xpose.msra.mxu0 0.0
        %990 = vmatprep.subr.mxu0 0.0
        %991 = vmatpush1.xpose.msra.mxu0 0.0
        %992 = vmatprep.subr.mxu0 0.0
        %993 = vmatpush1.xpose.msra.mxu0 0.0
        %994 = vmatprep.subr.mxu0 0.0
        %995 = vmatpush1.xpose.msra.mxu0 0.0
        %996 = vmatprep.subr.mxu0 0.0
        %997 = vmatpush1.xpose.msra.mxu0 0.0
        %998 = vmatprep.subr.mxu0 0.0
        %999 = vmatpush1.xpose.msra.mxu0 0.0
        %1000 = vmatprep.subr.mxu0 0.0
        %1001 = vmatpush1.xpose.msra.mxu0 0.0
        %1002 = vmatprep.subr.mxu0 0.0
        %1003 = vmatpush1.xpose.msra.mxu0 0.0
        %1004 = vmatprep.subr.mxu0 0.0
        %1005 = vmatpush1.xpose.msra.mxu0 0.0
        %1006 = vmatprep.subr.mxu0 0.0
        %1007 = vmatpush1.xpose.msra.mxu0 0.0
        %1008 = vmatprep.subr.mxu0 0.0
        %1009 = vmatpush1.xpose.msra.mxu0 0.0
        %1010 = vmatprep.subr.mxu0 0.0
        %1011 = vmatpush1.xpose.msra.mxu0 0.0
        %1012 = vmatprep.subr.mxu0 0.0
        %1013 = vmatpush1.xpose.msra.mxu0 0.0
        %1014 = vmatprep.subr.mxu0 0.0
        %1015 = vmatpush1.xpose.msra.mxu0 0.0
        %1016 = vmatprep.subr.mxu0 0.0
        %1017 = vmatpush1.xpose.msra.mxu0 0.0
        %1018 = vmatprep.subr.mxu0 0.0
        %1019 = vmatpush1.xpose.msra.mxu0 0.0
        %1020 = vmatprep.subr.mxu0 0.0
        %1021 = vmatpush1.xpose.msra.mxu0 0.0
        %1022 = vmatprep.subr.mxu0 0.0
        %1023 = vmatpush1.xpose.msra.mxu0 0.0
        %1024 = vmatprep.subr.mxu0 0.0
        %1025 = vmatpush1.xpose.msra.mxu0 0.0
        %1026 = vmatprep.mubr.f32.mxu0 0.0
        %1027 = vmatmul.mubr.f32.gmra.mrb[0].mxu0 %v958
        %v1028 = vpop.f32.mrb[0].mxu0
        %v1029 = vadd.f32 0.0, %v1028
        %v1030 = vpop.f32.mrb[0].mxu0
        %1031 = vdwg.mxu0
        %v1032 = vsel %vm791, %v1029, -inf
        %1033 = vmax.xlane.f32.xlu0 %v1032
        %v1034 = vpop.xlane.xlu0 %1033
        %v1035 = vsub.f32 %v1029, %v1034
        %v1036 = vmul.f32 %v1035, 1.442695
        %v1037 = vpow.pop %v1036
        %v1038 = vsel %vm791, %v1037, 0.0
        %1039 = vadd.xlane.f32.xlu0 %v1038
        %v1040 = vpop.xlane.xlu0 %1039
        %v1041 = vrcp.pop %v1040
        %v1042 = vmul.f32 %v1037, %v1041
        %1043 = vrot.lane.b32.xlu0 %v780, 56
        %v1044 = vpop.permute.xlu0 %1043
        %v1047 = vsel %vm791, %v1042, 0
        %1049 = vmatprep.subr.mxu0 0.0
        %1050 = vmatpush1.msra.mxu0 %v1044
        %1051 = vmatprep.subr.mxu0 0.0
        %1052 = vmatpush1.msra.mxu0 0.0
        %1053 = vmatprep.subr.mxu0 0.0
        %1054 = vmatpush1.msra.mxu0 0.0
        %1055 = vmatprep.subr.mxu0 0.0
        %1056 = vmatpush1.msra.mxu0 0.0
        %1057 = vmatprep.subr.mxu0 0.0
        %1058 = vmatpush1.msra.mxu0 0.0
        %1059 = vmatprep.subr.mxu0 0.0
        %1060 = vmatpush1.msra.mxu0 0.0
        %1061 = vmatprep.subr.mxu0 0.0
        %1062 = vmatpush1.msra.mxu0 0.0
        %1063 = vmatprep.subr.mxu0 0.0
        %1064 = vmatpush1.msra.mxu0 0.0
        %1065 = vmatprep.subr.mxu0 0.0
        %1066 = vmatpush1.msra.mxu0 0.0
        %1067 = vmatprep.subr.mxu0 0.0
        %1068 = vmatpush1.msra.mxu0 0.0
        %1069 = vmatprep.subr.mxu0 0.0
        %1070 = vmatpush1.msra.mxu0 0.0
        %1071 = vmatprep.subr.mxu0 0.0
        %1072 = vmatpush1.msra.mxu0 0.0
        %1073 = vmatprep.subr.mxu0 0.0
        %1074 = vmatpush1.msra.mxu0 0.0
        %1075 = vmatprep.subr.mxu0 0.0
        %1076 = vmatpush1.msra.mxu0 0.0
        %1077 = vmatprep.subr.mxu0 0.0
        %1078 = vmatpush1.msra.mxu0 0.0
        %1079 = vmatprep.subr.mxu0 0.0
        %1080 = vmatpush1.msra.mxu0 0.0
        %1081 = vmatprep.subr.mxu0 0.0
        %1082 = vmatpush1.msra.mxu0 0.0
        %1083 = vmatprep.subr.mxu0 0.0
        %1084 = vmatpush1.msra.mxu0 0.0
        %1085 = vmatprep.subr.mxu0 0.0
        %1086 = vmatpush1.msra.mxu0 0.0
        %1087 = vmatprep.subr.mxu0 0.0
        %1088 = vmatpush1.msra.mxu0 0.0
        %1089 = vmatprep.subr.mxu0 0.0
        %1090 = vmatpush1.msra.mxu0 0.0
        %1091 = vmatprep.subr.mxu0 0.0
        %1092 = vmatpush1.msra.mxu0 0.0
        %1093 = vmatprep.subr.mxu0 0.0
        %1094 = vmatpush1.msra.mxu0 0.0
        %1095 = vmatprep.subr.mxu0 0.0
        %1096 = vmatpush1.msra.mxu0 0.0
        %1097 = vmatprep.subr.mxu0 0.0
        %1098 = vmatpush1.msra.mxu0 0.0
        %1099 = vmatprep.subr.mxu0 0.0
        %1100 = vmatpush1.msra.mxu0 0.0
        %1101 = vmatprep.subr.mxu0 0.0
        %1102 = vmatpush1.msra.mxu0 0.0
        %1103 = vmatprep.subr.mxu0 0.0
        %1104 = vmatpush1.msra.mxu0 0.0
        %1105 = vmatprep.subr.mxu0 0.0
        %1106 = vmatpush1.msra.mxu0 0.0
        %1107 = vmatprep.subr.mxu0 0.0
        %1108 = vmatpush1.msra.mxu0 0.0
        %1109 = vmatprep.subr.mxu0 0.0
        %1110 = vmatpush1.msra.mxu0 0.0
        %1111 = vmatprep.subr.mxu0 0.0
        %1112 = vmatpush1.msra.mxu0 0.0
        %1113 = vmatprep.mubr.f32.mxu0 0.0
        %1114 = vmatmul.mubr.f32.gmra.mrb[0].mxu0 %v1047
        %v1115 = vpop.f32.mrb[0].mxu0
        %v1116 = vadd.f32 0.0, %v1115
        %v1117 = vpop.f32.mrb[0].mxu0
        %1118 = vdwg.mxu0
        %v1120 = vsel %vm791, %v1116, 0
        %1122 = vmatprep.subr.mxu0 0.0
        %1123 = vmatpush1.msra.mxu0 %v785
        %1124 = vmatprep.subr.mxu0 0.0
        %1125 = vmatpush1.msra.mxu0 0.0
        %1126 = vmatprep.subr.mxu0 0.0
        %1127 = vmatpush1.msra.mxu0 0.0
        %1128 = vmatprep.subr.mxu0 0.0
        %1129 = vmatpush1.msra.mxu0 0.0
        %1130 = vmatprep.subr.mxu0 0.0
        %1131 = vmatpush1.msra.mxu0 0.0
        %1132 = vmatprep.subr.mxu0 0.0
        %1133 = vmatpush1.msra.mxu0 0.0
        %1134 = vmatprep.subr.mxu0 0.0
        %1135 = vmatpush1.msra.mxu0 0.0
        %1136 = vmatprep.subr.mxu0 0.0
        %1137 = vmatpush1.msra.mxu0 0.0
        %1138 = vmatprep.subr.mxu0 0.0
        %1139 = vmatpush1.msra.mxu0 0.0
        %1140 = vmatprep.subr.mxu0 0.0
        %1141 = vmatpush1.msra.mxu0 0.0
        %1142 = vmatprep.subr.mxu0 0.0
        %1143 = vmatpush1.msra.mxu0 0.0
        %1144 = vmatprep.subr.mxu0 0.0
        %1145 = vmatpush1.msra.mxu0 0.0
        %1146 = vmatprep.subr.mxu0 0.0
        %1147 = vmatpush1.msra.mxu0 0.0
        %1148 = vmatprep.subr.mxu0 0.0
        %1149 = vmatpush1.msra.mxu0 0.0
        %1150 = vmatprep.subr.mxu0 0.0
        %1151 = vmatpush1.msra.mxu0 0.0
        %1152 = vmatprep.subr.mxu0 0.0
        %1153 = vmatpush1.msra.mxu0 0.0
        %1154 = vmatprep.subr.mxu0 0.0
        %1155 = vmatpush1.msra.mxu0 0.0
        %1156 = vmatprep.subr.mxu0 0.0
        %1157 = vmatpush1.msra.mxu0 0.0
        %1158 = vmatprep.subr.mxu0 0.0
        %1159 = vmatpush1.msra.mxu0 0.0
        %1160 = vmatprep.subr.mxu0 0.0
        %1161 = vmatpush1.msra.mxu0 0.0
        %1162 = vmatprep.subr.mxu0 0.0
        %1163 = vmatpush1.msra.mxu0 0.0
        %1164 = vmatprep.subr.mxu0 0.0
        %1165 = vmatpush1.msra.mxu0 0.0
        %1166 = vmatprep.subr.mxu0 0.0
        %1167 = vmatpush1.msra.mxu0 0.0
        %1168 = vmatprep.subr.mxu0 0.0
        %1169 = vmatpush1.msra.mxu0 0.0
        %1170 = vmatprep.subr.mxu0 0.0
        %1171 = vmatpush1.msra.mxu0 0.0
        %1172 = vmatprep.subr.mxu0 0.0
        %1173 = vmatpush1.msra.mxu0 0.0
        %1174 = vmatprep.subr.mxu0 0.0
        %1175 = vmatpush1.msra.mxu0 0.0
        %1176 = vmatprep.subr.mxu0 0.0
        %1177 = vmatpush1.msra.mxu0 0.0
        %1178 = vmatprep.subr.mxu0 0.0
        %1179 = vmatpush1.msra.mxu0 0.0
        %1180 = vmatprep.subr.mxu0 0.0
        %1181 = vmatpush1.msra.mxu0 0.0
        %1182 = vmatprep.subr.mxu0 0.0
        %1183 = vmatpush1.msra.mxu0 0.0
        %1184 = vmatprep.subr.mxu0 0.0
        %1185 = vmatpush1.msra.mxu0 0.0
        %1186 = vmatprep.mubr.f32.mxu0 0.0
        %1187 = vmatmul.mubr.f32.gmra.mrb[0].mxu0 %v1120
        %v1188 = vpop.f32.mrb[0].mxu0
        %v1189 = vadd.f32 0.0, %v1188
        %v1190 = vpop.f32.mrb[0].mxu0
        %1191 = vdwg.mxu0
        %v1193 = vsel %vm791, %v951, 0
        %1195 = vmatprep.subr.mxu0 0.0
        %1196 = vmatpush1.msra.mxu0 %v784
        %1197 = vmatprep.subr.mxu0 0.0
        %1198 = vmatpush1.msra.mxu0 0.0
        %1199 = vmatprep.subr.mxu0 0.0
        %1200 = vmatpush1.msra.mxu0 0.0
        %1201 = vmatprep.subr.mxu0 0.0
        %1202 = vmatpush1.msra.mxu0 0.0
        %1203 = vmatprep.subr.mxu0 0.0
        %1204 = vmatpush1.msra.mxu0 0.0
        %1205 = vmatprep.subr.mxu0 0.0
        %1206 = vmatpush1.msra.mxu0 0.0
        %1207 = vmatprep.subr.mxu0 0.0
        %1208 = vmatpush1.msra.mxu0 0.0
        %1209 = vmatprep.subr.mxu0 0.0
        %1210 = vmatpush1.msra.mxu0 0.0
        %1211 = vmatprep.subr.mxu0 0.0
        %1212 = vmatpush1.msra.mxu0 0.0
        %1213 = vmatprep.subr.mxu0 0.0
        %1214 = vmatpush1.msra.mxu0 0.0
        %1215 = vmatprep.subr.mxu0 0.0
        %1216 = vmatpush1.msra.mxu0 0.0
        %1217 = vmatprep.subr.mxu0 0.0
        %1218 = vmatpush1.msra.mxu0 0.0
        %1219 = vmatprep.subr.mxu0 0.0
        %1220 = vmatpush1.msra.mxu0 0.0
        %1221 = vmatprep.subr.mxu0 0.0
        %1222 = vmatpush1.msra.mxu0 0.0
        %1223 = vmatprep.subr.mxu0 0.0
        %1224 = vmatpush1.msra.mxu0 0.0
        %1225 = vmatprep.subr.mxu0 0.0
        %1226 = vmatpush1.msra.mxu0 0.0
        %1227 = vmatprep.subr.mxu0 0.0
        %1228 = vmatpush1.msra.mxu0 0.0
        %1229 = vmatprep.subr.mxu0 0.0
        %1230 = vmatpush1.msra.mxu0 0.0
        %1231 = vmatprep.subr.mxu0 0.0
        %1232 = vmatpush1.msra.mxu0 0.0
        %1233 = vmatprep.subr.mxu0 0.0
        %1234 = vmatpush1.msra.mxu0 0.0
        %1235 = vmatprep.subr.mxu0 0.0
        %1236 = vmatpush1.msra.mxu0 0.0
        %1237 = vmatprep.subr.mxu0 0.0
        %1238 = vmatpush1.msra.mxu0 0.0
        %1239 = vmatprep.subr.mxu0 0.0
        %1240 = vmatpush1.msra.mxu0 0.0
        %1241 = vmatprep.subr.mxu0 0.0
        %1242 = vmatpush1.msra.mxu0 0.0
        %1243 = vmatprep.subr.mxu0 0.0
        %1244 = vmatpush1.msra.mxu0 0.0
        %1245 = vmatprep.subr.mxu0 0.0
        %1246 = vmatpush1.msra.mxu0 0.0
        %1247 = vmatprep.subr.mxu0 0.0
        %1248 = vmatpush1.msra.mxu0 0.0
        %1249 = vmatprep.subr.mxu0 0.0
        %1250 = vmatpush1.msra.mxu0 0.0
        %1251 = vmatprep.subr.mxu0 0.0
        %1252 = vmatpush1.msra.mxu0 0.0
        %1253 = vmatprep.subr.mxu0 0.0
        %1254 = vmatpush1.msra.mxu0 0.0
        %1255 = vmatprep.subr.mxu0 0.0
        %1256 = vmatpush1.msra.mxu0 0.0
        %1257 = vmatprep.subr.mxu0 0.0
        %1258 = vmatpush1.msra.mxu0 0.0
        %1259 = vmatprep.mubr.f32.mxu0 0.0
        %1260 = vmatmul.mubr.f32.gmra.mrb[0].mxu0 %v1193
        %v1261 = vpop.f32.mrb[0].mxu0
        %v1262 = vadd.f32 %v1189, %v1261
        %v1263 = vpop.f32.mrb[0].mxu0
        %1264 = vdwg.mxu0
        %1265 = vrot.lane.b32.xlu0 %v783, 112
        %v1266 = vpop.permute.xlu0 %1265
        %1267 = vrot.lane.b32.xlu0 %v780, 80
        %v1268 = vpop.permute.xlu0 %1267
        %v1269 = vsel %vm791, %v1266, 0
        %v1271 = vsel %vm791, %v1268, 0
        %1273 = vmatprep.subr.mxu0 0.0
        %1274 = vmatpush1.xpose.msra.mxu0 %v1271
        %1275 = vmatprep.subr.mxu0 0.0
        %1276 = vmatpush1.xpose.msra.mxu0 0.0
        %1277 = vmatprep.subr.mxu0 0.0
        %1278 = vmatpush1.xpose.msra.mxu0 0.0
        %1279 = vmatprep.subr.mxu0 0.0
        %1280 = vmatpush1.xpose.msra.mxu0 0.0
        %1281 = vmatprep.subr.mxu0 0.0
        %1282 = vmatpush1.xpose.msra.mxu0 0.0
        %1283 = vmatprep.subr.mxu0 0.0
        %1284 = vmatpush1.xpose.msra.mxu0 0.0
        %1285 = vmatprep.subr.mxu0 0.0
        %1286 = vmatpush1.xpose.msra.mxu0 0.0
        %1287 = vmatprep.subr.mxu0 0.0
        %1288 = vmatpush1.xpose.msra.mxu0 0.0
        %1289 = vmatprep.subr.mxu0 0.0
        %1290 = vmatpush1.xpose.msra.mxu0 0.0
        %1291 = vmatprep.subr.mxu0 0.0
        %1292 = vmatpush1.xpose.msra.mxu0 0.0
        %1293 = vmatprep.subr.mxu0 0.0
        %1294 = vmatpush1.xpose.msra.mxu0 0.0
        %1295 = vmatprep.subr.mxu0 0.0
        %1296 = vmatpush1.xpose.msra.mxu0 0.0
        %1297 = vmatprep.subr.mxu0 0.0
        %1298 = vmatpush1.xpose.msra.mxu0 0.0
        %1299 = vmatprep.subr.mxu0 0.0
        %1300 = vmatpush1.xpose.msra.mxu0 0.0
        %1301 = vmatprep.subr.mxu0 0.0
        %1302 = vmatpush1.xpose.msra.mxu0 0.0
        %1303 = vmatprep.subr.mxu0 0.0
        %1304 = vmatpush1.xpose.msra.mxu0 0.0
        %1305 = vmatprep.subr.mxu0 0.0
        %1306 = vmatpush1.xpose.msra.mxu0 0.0
        %1307 = vmatprep.subr.mxu0 0.0
        %1308 = vmatpush1.xpose.msra.mxu0 0.0
        %1309 = vmatprep.subr.mxu0 0.0
        %1310 = vmatpush1.xpose.msra.mxu0 0.0
        %1311 = vmatprep.subr.mxu0 0.0
        %1312 = vmatpush1.xpose.msra.mxu0 0.0
        %1313 = vmatprep.subr.mxu0 0.0
        %1314 = vmatpush1.xpose.msra.mxu0 0.0
        %1315 = vmatprep.subr.mxu0 0.0
        %1316 = vmatpush1.xpose.msra.mxu0 0.0
        %1317 = vmatprep.subr.mxu0 0.0
        %1318 = vmatpush1.xpose.msra.mxu0 0.0
        %1319 = vmatprep.subr.mxu0 0.0
        %1320 = vmatpush1.xpose.msra.mxu0 0.0
        %1321 = vmatprep.subr.mxu0 0.0
        %1322 = vmatpush1.xpose.msra.mxu0 0.0
        %1323 = vmatprep.subr.mxu0 0.0
        %1324 = vmatpush1.xpose.msra.mxu0 0.0
        %1325 = vmatprep.subr.mxu0 0.0
        %1326 = vmatpush1.xpose.msra.mxu0 0.0
        %1327 = vmatprep.subr.mxu0 0.0
        %1328 = vmatpush1.xpose.msra.mxu0 0.0
        %1329 = vmatprep.subr.mxu0 0.0
        %1330 = vmatpush1.xpose.msra.mxu0 0.0
        %1331 = vmatprep.subr.mxu0 0.0
        %1332 = vmatpush1.xpose.msra.mxu0 0.0
        %1333 = vmatprep.subr.mxu0 0.0
        %1334 = vmatpush1.xpose.msra.mxu0 0.0
        %1335 = vmatprep.subr.mxu0 0.0
        %1336 = vmatpush1.xpose.msra.mxu0 0.0
        %1337 = vmatprep.mubr.f32.mxu0 0.0
        %1338 = vmatmul.mubr.f32.gmra.mrb[0].mxu0 %v1269
        %v1339 = vpop.f32.mrb[0].mxu0
        %v1340 = vadd.f32 0.0, %v1339
        %v1341 = vpop.f32.mrb[0].mxu0
        %1342 = vdwg.mxu0
        %v1343 = vsel %vm791, %v1340, -inf
        %1344 = vmax.xlane.f32.xlu0 %v1343
        %v1345 = vpop.xlane.xlu0 %1344
        %v1346 = vsub.f32 %v1340, %v1345
        %v1347 = vmul.f32 %v1346, 1.442695
        %v1348 = vpow.pop %v1347
        %v1349 = vsel %vm791, %v1348, 0.0
        %1350 = vadd.xlane.f32.xlu0 %v1349
        %v1351 = vpop.xlane.xlu0 %1350
        %v1352 = vrcp.pop %v1351
        %v1353 = vmul.f32 %v1348, %v1352
        %1354 = vrot.lane.b32.xlu0 %v780, 48
        %v1355 = vpop.permute.xlu0 %1354
        %v1358 = vsel %vm791, %v1353, 0
        %1360 = vmatprep.subr.mxu0 0.0
        %1361 = vmatpush1.msra.mxu0 %v1355
        %1362 = vmatprep.subr.mxu0 0.0
        %1363 = vmatpush1.msra.mxu0 0.0
        %1364 = vmatprep.subr.mxu0 0.0
        %1365 = vmatpush1.msra.mxu0 0.0
        %1366 = vmatprep.subr.mxu0 0.0
        %1367 = vmatpush1.msra.mxu0 0.0
        %1368 = vmatprep.subr.mxu0 0.0
        %1369 = vmatpush1.msra.mxu0 0.0
        %1370 = vmatprep.subr.mxu0 0.0
        %1371 = vmatpush1.msra.mxu0 0.0
        %1372 = vmatprep.subr.mxu0 0.0
        %1373 = vmatpush1.msra.mxu0 0.0
        %1374 = vmatprep.subr.mxu0 0.0
        %1375 = vmatpush1.msra.mxu0 0.0
        %1376 = vmatprep.subr.mxu0 0.0
        %1377 = vmatpush1.msra.mxu0 0.0
        %1378 = vmatprep.subr.mxu0 0.0
        %1379 = vmatpush1.msra.mxu0 0.0
        %1380 = vmatprep.subr.mxu0 0.0
        %1381 = vmatpush1.msra.mxu0 0.0
        %1382 = vmatprep.subr.mxu0 0.0
        %1383 = vmatpush1.msra.mxu0 0.0
        %1384 = vmatprep.subr.mxu0 0.0
        %1385 = vmatpush1.msra.mxu0 0.0
        %1386 = vmatprep.subr.mxu0 0.0
        %1387 = vmatpush1.msra.mxu0 0.0
        %1388 = vmatprep.subr.mxu0 0.0
        %1389 = vmatpush1.msra.mxu0 0.0
        %1390 = vmatprep.subr.mxu0 0.0
        %1391 = vmatpush1.msra.mxu0 0.0
        %1392 = vmatprep.subr.mxu0 0.0
        %1393 = vmatpush1.msra.mxu0 0.0
        %1394 = vmatprep.subr.mxu0 0.0
        %1395 = vmatpush1.msra.mxu0 0.0
        %1396 = vmatprep.subr.mxu0 0.0
        %1397 = vmatpush1.msra.mxu0 0.0
        %1398 = vmatprep.subr.mxu0 0.0
        %1399 = vmatpush1.msra.mxu0 0.0
        %1400 = vmatprep.subr.mxu0 0.0
        %1401 = vmatpush1.msra.mxu0 0.0
        %1402 = vmatprep.subr.mxu0 0.0
        %1403 = vmatpush1.msra.mxu0 0.0
        %1404 = vmatprep.subr.mxu0 0.0
        %1405 = vmatpush1.msra.mxu0 0.0
        %1406 = vmatprep.subr.mxu0 0.0
        %1407 = vmatpush1.msra.mxu0 0.0
        %1408 = vmatprep.subr.mxu0 0.0
        %1409 = vmatpush1.msra.mxu0 0.0
        %1410 = vmatprep.subr.mxu0 0.0
        %1411 = vmatpush1.msra.mxu0 0.0
        %1412 = vmatprep.subr.mxu0 0.0
        %1413 = vmatpush1.msra.mxu0 0.0
        %1414 = vmatprep.subr.mxu0 0.0
        %1415 = vmatpush1.msra.mxu0 0.0
        %1416 = vmatprep.subr.mxu0 0.0
        %1417 = vmatpush1.msra.mxu0 0.0
        %1418 = vmatprep.subr.mxu0 0.0
        %1419 = vmatpush1.msra.mxu0 0.0
        %1420 = vmatprep.subr.mxu0 0.0
        %1421 = vmatpush1.msra.mxu0 0.0
        %1422 = vmatprep.subr.mxu0 0.0
        %1423 = vmatpush1.msra.mxu0 0.0
        %1424 = vmatprep.mubr.f32.mxu0 0.0
        %1425 = vmatmul.mubr.f32.gmra.mrb[0].mxu0 %v1358
        %v1426 = vpop.f32.mrb[0].mxu0
        %v1427 = vadd.f32 0.0, %v1426
        %v1428 = vpop.f32.mrb[0].mxu0
        %1429 = vdwg.mxu0
        %v1431 = vsel %vm791, %v1427, 0
        %1433 = vmatprep.subr.mxu0 0.0
        %1434 = vmatpush1.msra.mxu0 %v786
        %1435 = vmatprep.subr.mxu0 0.0
        %1436 = vmatpush1.msra.mxu0 0.0
        %1437 = vmatprep.subr.mxu0 0.0
        %1438 = vmatpush1.msra.mxu0 0.0
        %1439 = vmatprep.subr.mxu0 0.0
        %1440 = vmatpush1.msra.mxu0 0.0
        %1441 = vmatprep.subr.mxu0 0.0
        %1442 = vmatpush1.msra.mxu0 0.0
        %1443 = vmatprep.subr.mxu0 0.0
        %1444 = vmatpush1.msra.mxu0 0.0
        %1445 = vmatprep.subr.mxu0 0.0
        %1446 = vmatpush1.msra.mxu0 0.0
        %1447 = vmatprep.subr.mxu0 0.0
        %1448 = vmatpush1.msra.mxu0 0.0
        %1449 = vmatprep.subr.mxu0 0.0
        %1450 = vmatpush1.msra.mxu0 0.0
        %1451 = vmatprep.subr.mxu0 0.0
        %1452 = vmatpush1.msra.mxu0 0.0
        %1453 = vmatprep.subr.mxu0 0.0
        %1454 = vmatpush1.msra.mxu0 0.0
        %1455 = vmatprep.subr.mxu0 0.0
        %1456 = vmatpush1.msra.mxu0 0.0
        %1457 = vmatprep.subr.mxu0 0.0
        %1458 = vmatpush1.msra.mxu0 0.0
        %1459 = vmatprep.subr.mxu0 0.0
        %1460 = vmatpush1.msra.mxu0 0.0
        %1461 = vmatprep.subr.mxu0 0.0
        %1462 = vmatpush1.msra.mxu0 0.0
        %1463 = vmatprep.subr.mxu0 0.0
        %1464 = vmatpush1.msra.mxu0 0.0
        %1465 = vmatprep.subr.mxu0 0.0
        %1466 = vmatpush1.msra.mxu0 0.0
        %1467 = vmatprep.subr.mxu0 0.0
        %1468 = vmatpush1.msra.mxu0 0.0
        %1469 = vmatprep.subr.mxu0 0.0
        %1470 = vmatpush1.msra.mxu0 0.0
        %1471 = vmatprep.subr.mxu0 0.0
        %1472 = vmatpush1.msra.mxu0 0.0
        %1473 = vmatprep.subr.mxu0 0.0
        %1474 = vmatpush1.msra.mxu0 0.0
        %1475 = vmatprep.subr.mxu0 0.0
        %1476 = vmatpush1.msra.mxu0 0.0
        %1477 = vmatprep.subr.mxu0 0.0
        %1478 = vmatpush1.msra.mxu0 0.0
        %1479 = vmatprep.subr.mxu0 0.0
        %1480 = vmatpush1.msra.mxu0 0.0
        %1481 = vmatprep.subr.mxu0 0.0
        %1482 = vmatpush1.msra.mxu0 0.0
        %1483 = vmatprep.subr.mxu0 0.0
        %1484 = vmatpush1.msra.mxu0 0.0
        %1485 = vmatprep.subr.mxu0 0.0
        %1486 = vmatpush1.msra.mxu0 0.0
        %1487 = vmatprep.subr.mxu0 0.0
        %1488 = vmatpush1.msra.mxu0 0.0
        %1489 = vmatprep.subr.mxu0 0.0
        %1490 = vmatpush1.msra.mxu0 0.0
        %1491 = vmatprep.subr.mxu0 0.0
        %1492 = vmatpush1.msra.mxu0 0.0
        %1493 = vmatprep.subr.mxu0 0.0
        %1494 = vmatpush1.msra.mxu0 0.0
        %1495 = vmatprep.subr.mxu0 0.0
        %1496 = vmatpush1.msra.mxu0 0.0
        %1497 = vmatprep.mubr.f32.mxu0 0.0
        %1498 = vmatmul.mubr.f32.gmra.mrb[0].mxu0 %v1431
        %v1499 = vpop.f32.mrb[0].mxu0
        %v1500 = vadd.f32 0.0, %v1499
        %v1501 = vpop.f32.mrb[0].mxu0
        %1502 = vdwg.mxu0
        %v1503 = vadd.f32 %v1262, %v1500
        %1504 = vrot.lane.b32.xlu0 %v783, 104
        %v1505 = vpop.permute.xlu0 %1504
        %1506 = vrot.lane.b32.xlu0 %v780, 72
        %v1507 = vpop.permute.xlu0 %1506
        %v1508 = vsel %vm791, %v1505, 0
        %v1510 = vsel %vm791, %v1507, 0
        %1512 = vmatprep.subr.mxu0 0.0
        %1513 = vmatpush1.xpose.msra.mxu0 %v1510
        %1514 = vmatprep.subr.mxu0 0.0
        %1515 = vmatpush1.xpose.msra.mxu0 0.0
        %1516 = vmatprep.subr.mxu0 0.0
        %1517 = vmatpush1.xpose.msra.mxu0 0.0
        %1518 = vmatprep.subr.mxu0 0.0
        %1519 = vmatpush1.xpose.msra.mxu0 0.0
        %1520 = vmatprep.subr.mxu0 0.0
        %1521 = vmatpush1.xpose.msra.mxu0 0.0
        %1522 = vmatprep.subr.mxu0 0.0
        %1523 = vmatpush1.xpose.msra.mxu0 0.0
        %1524 = vmatprep.subr.mxu0 0.0
        %1525 = vmatpush1.xpose.msra.mxu0 0.0
        %1526 = vmatprep.subr.mxu0 0.0
        %1527 = vmatpush1.xpose.msra.mxu0 0.0
        %1528 = vmatprep.subr.mxu0 0.0
        %1529 = vmatpush1.xpose.msra.mxu0 0.0
        %1530 = vmatprep.subr.mxu0 0.0
        %1531 = vmatpush1.xpose.msra.mxu0 0.0
        %1532 = vmatprep.subr.mxu0 0.0
        %1533 = vmatpush1.xpose.msra.mxu0 0.0
        %1534 = vmatprep.subr.mxu0 0.0
        %1535 = vmatpush1.xpose.msra.mxu0 0.0
        %1536 = vmatprep.subr.mxu0 0.0
        %1537 = vmatpush1.xpose.msra.mxu0 0.0
        %1538 = vmatprep.subr.mxu0 0.0
        %1539 = vmatpush1.xpose.msra.mxu0 0.0
        %1540 = vmatprep.subr.mxu0 0.0
        %1541 = vmatpush1.xpose.msra.mxu0 0.0
        %1542 = vmatprep.subr.mxu0 0.0
        %1543 = vmatpush1.xpose.msra.mxu0 0.0
        %1544 = vmatprep.subr.mxu0 0.0
        %1545 = vmatpush1.xpose.msra.mxu0 0.0
        %1546 = vmatprep.subr.mxu0 0.0
        %1547 = vmatpush1.xpose.msra.mxu0 0.0
        %1548 = vmatprep.subr.mxu0 0.0
        %1549 = vmatpush1.xpose.msra.mxu0 0.0
        %1550 = vmatprep.subr.mxu0 0.0
        %1551 = vmatpush1.xpose.msra.mxu0 0.0
        %1552 = vmatprep.subr.mxu0 0.0
        %1553 = vmatpush1.xpose.msra.mxu0 0.0
        %1554 = vmatprep.subr.mxu0 0.0
        %1555 = vmatpush1.xpose.msra.mxu0 0.0
        %1556 = vmatprep.subr.mxu0 0.0
        %1557 = vmatpush1.xpose.msra.mxu0 0.0
        %1558 = vmatprep.subr.mxu0 0.0
        %1559 = vmatpush1.xpose.msra.mxu0 0.0
        %1560 = vmatprep.subr.mxu0 0.0
        %1561 = vmatpush1.xpose.msra.mxu0 0.0
        %1562 = vmatprep.subr.mxu0 0.0
        %1563 = vmatpush1.xpose.msra.mxu0 0.0
        %1564 = vmatprep.subr.mxu0 0.0
        %1565 = vmatpush1.xpose.msra.mxu0 0.0
        %1566 = vmatprep.subr.mxu0 0.0
        %1567 = vmatpush1.xpose.msra.mxu0 0.0
        %1568 = vmatprep.subr.mxu0 0.0
        %1569 = vmatpush1.xpose.msra.mxu0 0.0
        %1570 = vmatprep.subr.mxu0 0.0
        %1571 = vmatpush1.xpose.msra.mxu0 0.0
        %1572 = vmatprep.subr.mxu0 0.0
        %1573 = vmatpush1.xpose.msra.mxu0 0.0
        %1574 = vmatprep.subr.mxu0 0.0
        %1575 = vmatpush1.xpose.msra.mxu0 0.0
        %1576 = vmatprep.mubr.f32.mxu0 0.0
        %1577 = vmatmul.mubr.f32.gmra.mrb[0].mxu0 %v1508
        %v1578 = vpop.f32.mrb[0].mxu0
        %v1579 = vadd.f32 0.0, %v1578
        %v1580 = vpop.f32.mrb[0].mxu0
        %1581 = vdwg.mxu0
        %v1582 = vsel %vm791, %v1579, -inf
        %1583 = vmax.xlane.f32.xlu0 %v1582
        %v1584 = vpop.xlane.xlu0 %1583
        %v1585 = vsub.f32 %v1579, %v1584
        %v1586 = vmul.f32 %v1585, 1.442695
        %v1587 = vpow.pop %v1586
        %v1588 = vsel %vm791, %v1587, 0.0
        %1589 = vadd.xlane.f32.xlu0 %v1588
        %v1590 = vpop.xlane.xlu0 %1589
        %v1591 = vrcp.pop %v1590
        %v1592 = vmul.f32 %v1587, %v1591
        %1593 = vrot.lane.b32.xlu0 %v780, 40
        %v1594 = vpop.permute.xlu0 %1593
        %v1597 = vsel %vm791, %v1592, 0
        %1599 = vmatprep.subr.mxu0 0.0
        %1600 = vmatpush1.msra.mxu0 %v1594
        %1601 = vmatprep.subr.mxu0 0.0
        %1602 = vmatpush1.msra.mxu0 0.0
        %1603 = vmatprep.subr.mxu0 0.0
        %1604 = vmatpush1.msra.mxu0 0.0
        %1605 = vmatprep.subr.mxu0 0.0
        %1606 = vmatpush1.msra.mxu0 0.0
        %1607 = vmatprep.subr.mxu0 0.0
        %1608 = vmatpush1.msra.mxu0 0.0
        %1609 = vmatprep.subr.mxu0 0.0
        %1610 = vmatpush1.msra.mxu0 0.0
        %1611 = vmatprep.subr.mxu0 0.0
        %1612 = vmatpush1.msra.mxu0 0.0
        %1613 = vmatprep.subr.mxu0 0.0
        %1614 = vmatpush1.msra.mxu0 0.0
        %1615 = vmatprep.subr.mxu0 0.0
        %1616 = vmatpush1.msra.mxu0 0.0
        %1617 = vmatprep.subr.mxu0 0.0
        %1618 = vmatpush1.msra.mxu0 0.0
        %1619 = vmatprep.subr.mxu0 0.0
        %1620 = vmatpush1.msra.mxu0 0.0
        %1621 = vmatprep.subr.mxu0 0.0
        %1622 = vmatpush1.msra.mxu0 0.0
        %1623 = vmatprep.subr.mxu0 0.0
        %1624 = vmatpush1.msra.mxu0 0.0
        %1625 = vmatprep.subr.mxu0 0.0
        %1626 = vmatpush1.msra.mxu0 0.0
        %1627 = vmatprep.subr.mxu0 0.0
        %1628 = vmatpush1.msra.mxu0 0.0
        %1629 = vmatprep.subr.mxu0 0.0
        %1630 = vmatpush1.msra.mxu0 0.0
        %1631 = vmatprep.subr.mxu0 0.0
        %1632 = vmatpush1.msra.mxu0 0.0
        %1633 = vmatprep.subr.mxu0 0.0
        %1634 = vmatpush1.msra.mxu0 0.0
        %1635 = vmatprep.subr.mxu0 0.0
        %1636 = vmatpush1.msra.mxu0 0.0
        %1637 = vmatprep.subr.mxu0 0.0
        %1638 = vmatpush1.msra.mxu0 0.0
        %1639 = vmatprep.subr.mxu0 0.0
        %1640 = vmatpush1.msra.mxu0 0.0
        %1641 = vmatprep.subr.mxu0 0.0
        %1642 = vmatpush1.msra.mxu0 0.0
        %1643 = vmatprep.subr.mxu0 0.0
        %1644 = vmatpush1.msra.mxu0 0.0
        %1645 = vmatprep.subr.mxu0 0.0
        %1646 = vmatpush1.msra.mxu0 0.0
        %1647 = vmatprep.subr.mxu0 0.0
        %1648 = vmatpush1.msra.mxu0 0.0
        %1649 = vmatprep.subr.mxu0 0.0
        %1650 = vmatpush1.msra.mxu0 0.0
        %1651 = vmatprep.subr.mxu0 0.0
        %1652 = vmatpush1.msra.mxu0 0.0
        %1653 = vmatprep.subr.mxu0 0.0
        %1654 = vmatpush1.msra.mxu0 0.0
        %1655 = vmatprep.subr.mxu0 0.0
        %1656 = vmatpush1.msra.mxu0 0.0
        %1657 = vmatprep.subr.mxu0 0.0
        %1658 = vmatpush1.msra.mxu0 0.0
        %1659 = vmatprep.subr.mxu0 0.0
        %1660 = vmatpush1.msra.mxu0 0.0
        %1661 = vmatprep.subr.mxu0 0.0
        %1662 = vmatpush1.msra.mxu0 0.0
        %1663 = vmatprep.mubr.f32.mxu0 0.0
        %1664 = vmatmul.mubr.f32.gmra.mrb[0].mxu0 %v1597
        %v1665 = vpop.f32.mrb[0].mxu0
        %v1666 = vadd.f32 0.0, %v1665
        %v1667 = vpop.f32.mrb[0].mxu0
        %1668 = vdwg.mxu0
        %v1670 = vsel %vm791, %v1666, 0
        %1672 = vmatprep.subr.mxu0 0.0
        %1673 = vmatpush1.msra.mxu0 %v787
        %1674 = vmatprep.subr.mxu0 0.0
        %1675 = vmatpush1.msra.mxu0 0.0
        %1676 = vmatprep.subr.mxu0 0.0
        %1677 = vmatpush1.msra.mxu0 0.0
        %1678 = vmatprep.subr.mxu0 0.0
        %1679 = vmatpush1.msra.mxu0 0.0
        %1680 = vmatprep.subr.mxu0 0.0
        %1681 = vmatpush1.msra.mxu0 0.0
        %1682 = vmatprep.subr.mxu0 0.0
        %1683 = vmatpush1.msra.mxu0 0.0
        %1684 = vmatprep.subr.mxu0 0.0
        %1685 = vmatpush1.msra.mxu0 0.0
        %1686 = vmatprep.subr.mxu0 0.0
        %1687 = vmatpush1.msra.mxu0 0.0
        %1688 = vmatprep.subr.mxu0 0.0
        %1689 = vmatpush1.msra.mxu0 0.0
        %1690 = vmatprep.subr.mxu0 0.0
        %1691 = vmatpush1.msra.mxu0 0.0
        %1692 = vmatprep.subr.mxu0 0.0
        %1693 = vmatpush1.msra.mxu0 0.0
        %1694 = vmatprep.subr.mxu0 0.0
        %1695 = vmatpush1.msra.mxu0 0.0
        %1696 = vmatprep.subr.mxu0 0.0
        %1697 = vmatpush1.msra.mxu0 0.0
        %1698 = vmatprep.subr.mxu0 0.0
        %1699 = vmatpush1.msra.mxu0 0.0
        %1700 = vmatprep.subr.mxu0 0.0
        %1701 = vmatpush1.msra.mxu0 0.0
        %1702 = vmatprep.subr.mxu0 0.0
        %1703 = vmatpush1.msra.mxu0 0.0
        %1704 = vmatprep.subr.mxu0 0.0
        %1705 = vmatpush1.msra.mxu0 0.0
        %1706 = vmatprep.subr.mxu0 0.0
        %1707 = vmatpush1.msra.mxu0 0.0
        %1708 = vmatprep.subr.mxu0 0.0
        %1709 = vmatpush1.msra.mxu0 0.0
        %1710 = vmatprep.subr.mxu0 0.0
        %1711 = vmatpush1.msra.mxu0 0.0
        %1712 = vmatprep.subr.mxu0 0.0
        %1713 = vmatpush1.msra.mxu0 0.0
        %1714 = vmatprep.subr.mxu0 0.0
        %1715 = vmatpush1.msra.mxu0 0.0
        %1716 = vmatprep.subr.mxu0 0.0
        %1717 = vmatpush1.msra.mxu0 0.0
        %1718 = vmatprep.subr.mxu0 0.0
        %1719 = vmatpush1.msra.mxu0 0.0
        %1720 = vmatprep.subr.mxu0 0.0
        %1721 = vmatpush1.msra.mxu0 0.0
        %1722 = vmatprep.subr.mxu0 0.0
        %1723 = vmatpush1.msra.mxu0 0.0
        %1724 = vmatprep.subr.mxu0 0.0
        %1725 = vmatpush1.msra.mxu0 0.0
        %1726 = vmatprep.subr.mxu0 0.0
        %1727 = vmatpush1.msra.mxu0 0.0
        %1728 = vmatprep.subr.mxu0 0.0
        %1729 = vmatpush1.msra.mxu0 0.0
        %1730 = vmatprep.subr.mxu0 0.0
        %1731 = vmatpush1.msra.mxu0 0.0
        %1732 = vmatprep.subr.mxu0 0.0
        %1733 = vmatpush1.msra.mxu0 0.0
        %1734 = vmatprep.subr.mxu0 0.0
        %1735 = vmatpush1.msra.mxu0 0.0
        %1736 = vmatprep.mubr.f32.mxu0 0.0
        %1737 = vmatmul.mubr.f32.gmra.mrb[0].mxu0 %v1670
        %v1738 = vpop.f32.mrb[0].mxu0
        %v1739 = vadd.f32 0.0, %v1738
        %v1740 = vpop.f32.mrb[0].mxu0
        %1741 = vdwg.mxu0
        %v1742 = vadd.f32 %v1503, %v1739
        %v1743 = vadd.f32 %v667, %v1742
        %v1744 = vld [vmem:[%s637] sm:$0x1]
        %v1746 = vlaneseq
        %v1747 = vshrl.u32 %v1746, 7
        %v1748 = vsub.s32 0, %v1747
        %v1749 = vrot.slane %v1744, %v1748
        %v1751 = vadd.f32 %v1743, %v1749
        %v1752 = vld [vmem:[%s640] sm:$0x1]
        %v1753 = vld [vmem:[%s643] sm:$0x1]
        %v1754 = vsel %vm670, %v1751, 0.0
        %1755 = vadd.xlane.f32.xlu0 %v1754
        %v1756 = vpop.xlane.xlu0 %1755
        %v1757 = vmul.f32 %v1756, %v674
        %v1758 = vsub.f32 %v1751, %v1757
        %v1759 = vmul.f32 %v1758, %v1758
        %v1760 = vsel %vm670, %v1759, 0.0
        %1761 = vadd.xlane.f32.xlu0 %v1760
        %v1762 = vpop.xlane.xlu0 %1761
        %v1763 = vmul.f32 %v1762, %v674
        %v1764 = vadd.f32 %v1763, 1e-05
        %v1765 = vrsqrt.pop %v1764
        %v1766 = vmul.f32 %v1758, %v1765
        %v1768 = vlaneseq
        %v1769 = vshrl.u32 %v1768, 7
        %v1770 = vsub.s32 0, %v1769
        %v1771 = vrot.slane %v1752, %v1770
        %v1773 = vmul.f32 %v1766, %v1771
        %v1775 = vlaneseq
        %v1776 = vshrl.u32 %v1775, 7
        %v1777 = vsub.s32 0, %v1776
        %v1778 = vrot.slane %v1753, %v1777
        %v1780 = vadd.f32 %v1773, %v1778
        %v1781 = vld [vmem:[%s648] sm:$0xff]
        %v1782 = vld [vmem:[%s648 + $0x8] sm:$0xff]
        %v1783 = vld [vmem:[%s648 + $0x10] sm:$0xff]
        %v1784 = vld [vmem:[%s648 + $0x18] sm:$0xff]
        %v1785 = vld [vmem:[%s651] sm:$0x1]
        %v1787 = vlaneseq
        %v1788 = vshrl.u32 %v1787, 7
        %v1789 = vsub.s32 0, %v1788
        %v1790 = vrot.slane %v1785, %v1789
        %v1793 = vsel %vm670, %v1780, 0
        %1795 = vmatprep.subr.mxu0 0.0
        %1796 = vmatpush1.msra.mxu0 %v1781
        %1797 = vmatprep.subr.mxu0 0.0
        %1798 = vmatpush1.msra.mxu0 %v1782
        %1799 = vmatprep.subr.mxu0 0.0
        %1800 = vmatpush1.msra.mxu0 %v1783
        %1801 = vmatprep.subr.mxu0 0.0
        %1802 = vmatpush1.msra.mxu0 %v1784
        %1803 = vmatprep.subr.mxu0 0.0
        %1804 = vmatpush1.msra.mxu0 0.0
        %1805 = vmatprep.subr.mxu0 0.0
        %1806 = vmatpush1.msra.mxu0 0.0
        %1807 = vmatprep.subr.mxu0 0.0
        %1808 = vmatpush1.msra.mxu0 0.0
        %1809 = vmatprep.subr.mxu0 0.0
        %1810 = vmatpush1.msra.mxu0 0.0
        %1811 = vmatprep.subr.mxu0 0.0
        %1812 = vmatpush1.msra.mxu0 0.0
        %1813 = vmatprep.subr.mxu0 0.0
        %1814 = vmatpush1.msra.mxu0 0.0
        %1815 = vmatprep.subr.mxu0 0.0
        %1816 = vmatpush1.msra.mxu0 0.0
        %1817 = vmatprep.subr.mxu0 0.0
        %1818 = vmatpush1.msra.mxu0 0.0
        %1819 = vmatprep.subr.mxu0 0.0
        %1820 = vmatpush1.msra.mxu0 0.0
        %1821 = vmatprep.subr.mxu0 0.0
        %1822 = vmatpush1.msra.mxu0 0.0
        %1823 = vmatprep.subr.mxu0 0.0
        %1824 = vmatpush1.msra.mxu0 0.0
        %1825 = vmatprep.subr.mxu0 0.0
        %1826 = vmatpush1.msra.mxu0 0.0
        %1827 = vmatprep.subr.mxu0 0.0
        %1828 = vmatpush1.msra.mxu0 0.0
        %1829 = vmatprep.subr.mxu0 0.0
        %1830 = vmatpush1.msra.mxu0 0.0
        %1831 = vmatprep.subr.mxu0 0.0
        %1832 = vmatpush1.msra.mxu0 0.0
        %1833 = vmatprep.subr.mxu0 0.0
        %1834 = vmatpush1.msra.mxu0 0.0
        %1835 = vmatprep.subr.mxu0 0.0
        %1836 = vmatpush1.msra.mxu0 0.0
        %1837 = vmatprep.subr.mxu0 0.0
        %1838 = vmatpush1.msra.mxu0 0.0
        %1839 = vmatprep.subr.mxu0 0.0
        %1840 = vmatpush1.msra.mxu0 0.0
        %1841 = vmatprep.subr.mxu0 0.0
        %1842 = vmatpush1.msra.mxu0 0.0
        %1843 = vmatprep.subr.mxu0 0.0
        %1844 = vmatpush1.msra.mxu0 0.0
        %1845 = vmatprep.subr.mxu0 0.0
        %1846 = vmatpush1.msra.mxu0 0.0
        %1847 = vmatprep.subr.mxu0 0.0
        %1848 = vmatpush1.msra.mxu0 0.0
        %1849 = vmatprep.subr.mxu0 0.0
        %1850 = vmatpush1.msra.mxu0 0.0
        %1851 = vmatprep.subr.mxu0 0.0
        %1852 = vmatpush1.msra.mxu0 0.0
        %1853 = vmatprep.subr.mxu0 0.0
        %1854 = vmatpush1.msra.mxu0 0.0
        %1855 = vmatprep.subr.mxu0 0.0
        %1856 = vmatpush1.msra.mxu0 0.0
        %1857 = vmatprep.subr.mxu0 0.0
        %1858 = vmatpush1.msra.mxu0 0.0
        %1859 = vmatprep.mubr.f32.mxu0 0.0
        %1860 = vmatmul.mubr.f32.gmra.mrb[0].mxu0 %v1793
        %v1861 = vpop.f32.mrb[0].mxu0
        %v1862 = vadd.f32 %v1790, %v1861
        %v1863 = vpop.f32.mrb[0].mxu0
        %1864 = vdwg.mxu0
        %v1865 = vmul.f32 %v1862, 1.702
        %v1866 = vxor.u32 %v1865, 2147483648
        %v1867 = vmul.f32 %v1866, 1.442695
        %v1868 = vpow.pop %v1867
        %v1869 = vadd.f32 %v1868, 1.0
        %v1870 = vrcp.pop %v1869
        %v1871 = vmul.f32 1.0, %v1870
        %v1872 = vmul.f32 %v1862, %v1871
        %v1873 = vld [vmem:[%s656] sm:$0xff]
        %v1874 = vld [vmem:[%s656 + $0x8] sm:$0xff]
        %v1875 = vld [vmem:[%s656 + $0x10] sm:$0xff]
        %v1876 = vld [vmem:[%s656 + $0x18] sm:$0xff]
        %v1877 = vld [vmem:[%s656 + $0x20] sm:$0xff]
        %v1878 = vld [vmem:[%s656 + $0x28] sm:$0xff]
        %v1879 = vld [vmem:[%s656 + $0x30] sm:$0xff]
        %v1880 = vld [vmem:[%s656 + $0x38] sm:$0xff]
        %v1881 = vld [vmem:[%s656 + $0x40] sm:$0xff]
        %v1882 = vld [vmem:[%s656 + $0x48] sm:$0xff]
        %v1883 = vld [vmem:[%s656 + $0x50] sm:$0xff]
        %v1884 = vld [vmem:[%s656 + $0x58] sm:$0xff]
        %v1885 = vld [vmem:[%s656 + $0x60] sm:$0xff]
        %v1886 = vld [vmem:[%s656 + $0x68] sm:$0xff]
        %v1887 = vld [vmem:[%s656 + $0x70] sm:$0xff]
        %v1888 = vld [vmem:[%s656 + $0x78] sm:$0xff]
        %v1889 = vld [vmem:[%s659] sm:$0x1]
        %v1891 = vlaneseq
        %v1892 = vshrl.u32 %v1891, 7
        %v1893 = vsub.s32 0, %v1892
        %v1894 = vrot.slane %v1889, %v1893
        %1896 = vmatprep.subr.mxu0 0.0
        %1897 = vmatpush1.msra.mxu0 %v1873
        %1898 = vmatprep.subr.mxu0 0.0
        %1899 = vmatpush1.msra.mxu0 %v1874
        %1900 = vmatprep.subr.mxu0 0.0
        %1901 = vmatpush1.msra.mxu0 %v1875
        %1902 = vmatprep.subr.mxu0 0.0
        %1903 = vmatpush1.msra.mxu0 %v1876
        %1904 = vmatprep.subr.mxu0 0.0
        %1905 = vmatpush1.msra.mxu0 %v1877
        %1906 = vmatprep.subr.mxu0 0.0
        %1907 = vmatpush1.msra.mxu0 %v1878
        %1908 = vmatprep.subr.mxu0 0.0
        %1909 = vmatpush1.msra.mxu0 %v1879
        %1910 = vmatprep.subr.mxu0 0.0
        %1911 = vmatpush1.msra.mxu0 %v1880
        %1912 = vmatprep.subr.mxu0 0.0
        %1913 = vmatpush1.msra.mxu0 %v1881
        %1914 = vmatprep.subr.mxu0 0.0
        %1915 = vmatpush1.msra.mxu0 %v1882
        %1916 = vmatprep.subr.mxu0 0.0
        %1917 = vmatpush1.msra.mxu0 %v1883
        %1918 = vmatprep.subr.mxu0 0.0
        %1919 = vmatpush1.msra.mxu0 %v1884
        %1920 = vmatprep.subr.mxu0 0.0
        %1921 = vmatpush1.msra.mxu0 %v1885
        %1922 = vmatprep.subr.mxu0 0.0
        %1923 = vmatpush1.msra.mxu0 %v1886
        %1924 = vmatprep.subr.mxu0 0.0
        %1925 = vmatpush1.msra.mxu0 %v1887
        %1926 = vmatprep.subr.mxu0 0.0
        %1927 = vmatpush1.msra.mxu0 %v1888
        %1928 = vmatprep.subr.mxu0 0.0
        %1929 = vmatpush1.msra.mxu0 0.0
        %1930 = vmatprep.subr.mxu0 0.0
        %1931 = vmatpush1.msra.mxu0 0.0
        %1932 = vmatprep.subr.mxu0 0.0
        %1933 = vmatpush1.msra.mxu0 0.0
        %1934 = vmatprep.subr.mxu0 0.0
        %1935 = vmatpush1.msra.mxu0 0.0
        %1936 = vmatprep.subr.mxu0 0.0
        %1937 = vmatpush1.msra.mxu0 0.0
        %1938 = vmatprep.subr.mxu0 0.0
        %1939 = vmatpush1.msra.mxu0 0.0
        %1940 = vmatprep.subr.mxu0 0.0
        %1941 = vmatpush1.msra.mxu0 0.0
        %1942 = vmatprep.subr.mxu0 0.0
        %1943 = vmatpush1.msra.mxu0 0.0
        %1944 = vmatprep.subr.mxu0 0.0
        %1945 = vmatpush1.msra.mxu0 0.0
        %1946 = vmatprep.subr.mxu0 0.0
        %1947 = vmatpush1.msra.mxu0 0.0
        %1948 = vmatprep.subr.mxu0 0.0
        %1949 = vmatpush1.msra.mxu0 0.0
        %1950 = vmatprep.subr.mxu0 0.0
        %1951 = vmatpush1.msra.mxu0 0.0
        %1952 = vmatprep.subr.mxu0 0.0
        %1953 = vmatpush1.msra.mxu0 0.0
        %1954 = vmatprep.subr.mxu0 0.0
        %1955 = vmatpush1.msra.mxu0 0.0
        %1956 = vmatprep.subr.mxu0 0.0
        %1957 = vmatpush1.msra.mxu0 0.0
        %1958 = vmatprep.subr.mxu0 0.0
        %1959 = vmatpush1.msra.mxu0 0.0
        %1960 = vmatprep.mubr.f32.mxu0 0.0
        %1961 = vmatmul.mubr.f32.gmra.mrb[0].mxu0 %v1872
        %v1962 = vpop.f32.mrb[0].mxu0
        %v1963 = vadd.f32 %v1894, %v1962
        %v1964 = vpop.f32.mrb[0].mxu0
        %1965 = vdwg.mxu0
        %v1966 = vadd.f32 %v1751, %v1963
        %1967 = vst.msk [vmem:[%s615] sm:$0xff] %vm670, %v1966
        %s1968 = sand.u32 %s388, 1
        %s1969 = scalar_lea.sflag [#allocation4], %s1968
        %s1970 = sand.u32 %s388, 1
        %s1971 = smul.addr %s1970, 8
        %s1972 = scalar_lea.vmem [#allocation5], %s1971
        // Predicated region
        $region81: #{tpu_custom_call.1} parent=71 // pred_check
          %p1973 = pneg %p398
        $region82: #{tpu_custom_call.1} parent=71 // pred_check_branch
          %1975 = sbr.rel (%p1973) target = $region84
        $region83: #{tpu_custom_call.1} parent=71 // pred_region
          %s1977 = ssub.s32 128, 128
          %1978 = vsyncadd %s1969, %s1977
          %s1979 = smul.addr %s34, 128
          %s1980 = scalar_lea.hbm %s13, %s1979
          %s1982 = sshll.u32 %s1972, 4
          %s1983 = int_to_ptr.vmem [resolvable:$true] %s1982
          %1985 = dma.vmem_to_hbm [thread:$0]  %s1983, 128, %s1980, %s1969
        $region84: #{tpu_custom_call.1} parent=71 // pred_fallthru
          _
      $region72: #{tpu_custom_call.1} parent=5 // pred_fallthru
        _
      %p1986 = scmp.le.s32.totalorder 2, %s25
      // Predicated region
      $region85: #{tpu_custom_call.1} parent=5 // pred_check
        %p1987 = pneg %p1986
      $region86: #{tpu_custom_call.1} parent=5 // pred_check_branch
        %1989 = sbr.rel (%p1987) target = $region88
      $region87: #{tpu_custom_call.1} parent=5 // pred_region
        %s1990 = ssub.s32 %s25, 2
        // Predicated region
        $region89: #{tpu_custom_call.1} parent=87 // pred_check
          %p1991 = pneg %p404
        $region90: #{tpu_custom_call.1} parent=87 // pred_check_branch
          %1993 = sbr.rel (%p1991) target = $region92
        $region91: #{tpu_custom_call.1} parent=87 // pred_region
          %s1994 = sand.u32 %s389, 1
          %s1995 = scalar_lea.sflag [#allocation4], %s1994
          %s1996 = sand.u32 %s389, 1
          %s1997 = smul.addr %s1996, 8
          %s1998 = scalar_lea.vmem [#allocation5], %s1997
          %1999 = dma.done %s1995, 128
        $region92: #{tpu_custom_call.1} parent=87 // pred_fallthru
          _
      $region88: #{tpu_custom_call.1} parent=5 // pred_fallthru
        _
    $region6: #{tpu_custom_call.1} parent=1 // loop_footer
      %s29 = sadd.s32 1, %s25
    $region7: #{tpu_custom_call.1} parent=1 // loop_footer_branch
      %24 = sbr.rel target = $region3
    $region8: #{tpu_custom_call.1} parent=1 // loop_exit
      _
    %2000 = vsyncpa [#allocation3], 1
    %s2001 = scalar_lea.sflag [#allocation3], 1
    %2002 = vsyncpa %s2001, 1
    %2003 = vsyncpa [#allocation4], 1
    %s2004 = scalar_lea.sflag [#allocation4], 1
    %2005 = vsyncpa %s2004, 1

</llo_original>
